<compile_context>
chip_gen: v7x
topology: tpu7x:2x2x1
jax: 0.10.0
libtpu: 0.0.40
codegen_flags: <defaults>
</compile_context>

<pallas_src>
import jax
import jax.numpy as jnp
from jax import lax
from jax.experimental import pallas as pl
from jax.experimental.pallas import tpu as pltpu


def _seq_classifier_kernel(x_ref,                          # (T, BB, D) time-major input, f32
                           w_ih1_ref, w_hh1_ref, b1_ref,   # LSTM1: (D,4H1) bf16, (H1,4H1) bf16, (1,4H1) f32
                           w_ih2_ref, w_hh2_ref, b2_ref,   # LSTM2: (H1,4H2) bf16, (H2,4H2) bf16, (1,4H2) f32
                           w_fc_ref, b_fc_ref,              # FC: (H2,C) bf16, (1,C) f32
                           out_ref):                        # (BB, C) softmax probs, f32
    T, BB, D = x_ref.shape
    H1 = w_hh1_ref.shape[0]
    H2 = w_hh2_ref.shape[0]

    # Load weights once (tiny; they stay resident in vregs/VMEM).
    w_hh1 = w_hh1_ref[...]
    w_ih2 = w_ih2_ref[...]
    w_hh2 = w_hh2_ref[...]

    # ---- hoisted layer-1 input projection: one MXU matmul, bias folded in ---
    # x is already time-major, so this reshape only merges leading dims (free)
    # and every per-step read below is a contiguous (BB, 4H1) slab.
    x_flat = x_ref[...].reshape(T * BB, D).astype(jnp.bfloat16)
    x_proj = (jnp.dot(x_flat, w_ih1_ref[...], preferred_element_type=jnp.float32)
              + b1_ref[...]).reshape(T, BB, 4 * H1)

    # ---- hoisted layer-2 bias broadcast (no per-step broadcast_in_dim) ------
    b2 = jnp.broadcast_to(b2_ref[...], (BB, 4 * H2))

    # ---- hoisted gate-lane masks: tanh gate (g) occupies lanes [2H, 3H) -----
    lanes1 = lax.broadcasted_iota(jnp.int32, (BB, 4 * H1), 1)
    g_mask1 = (lanes1 >= 2 * H1) & (lanes1 < 3 * H1)
    lanes2 = lax.broadcasted_iota(jnp.int32, (BB, 4 * H2), 1)
    g_mask2 = (lanes2 >= 2 * H2) & (lanes2 < 3 * H2)

    def cell_update(gates, g_mask, c, H):
        # Single EUP tanh pass over the full (BB, 4H) vreg.
        # Non-g lanes get sigmoid via the exact identity
        #   sigmoid(x) = 0.5 * (1 + tanh(x / 2));
        # the pre/post scaling is a lane-select + fma on the VPU (has slack).
        gs = jnp.where(g_mask, gates, 0.5 * gates)
        t = jnp.tanh(gs)
        act = jnp.where(g_mask, t, 0.5 * t + 0.5)
        # PyTorch gate order [i, f, g, o].
        i = act[:, 0 * H:1 * H]
        f = act[:, 1 * H:2 * H]
        g = act[:, 2 * H:3 * H]
        o = act[:, 3 * H:4 * H]
        c_new = f * c + i * g
        h_new = o * jnp.tanh(c_new)
        return h_new, c_new

    h1 = jnp.zeros((BB, H1), jnp.float32)
    c1 = jnp.zeros((BB, H1), jnp.float32)
    h2 = jnp.zeros((BB, H2), jnp.float32)
    c2 = jnp.zeros((BB, H2), jnp.float32)

    # Fully unrolled time loop (T static & small).  Serial critical path is
    # 2 MXU pushes per step (h1 @ w_hh1, then h1_new @ w_ih2); the layer-2
    # recurrent dot h2 @ w_hh2 depends only on the previous step, so the
    # scheduler can overlap it with layer-1 work.
    for t in range(T):
        r2 = jnp.dot(h2.astype(jnp.bfloat16), w_hh2,
                     preferred_element_type=jnp.float32)
        g1 = x_proj[t] + jnp.dot(h1.astype(jnp.bfloat16), w_hh1,
                                 preferred_element_type=jnp.float32)
        h1, c1 = cell_update(g1, g_mask1, c1, H1)
        # dropout(p=0.2) between the LSTM layers: identity (eval-mode).
        g2 = jnp.dot(h1.astype(jnp.bfloat16), w_ih2,
                     preferred_element_type=jnp.float32) + r2 + b2
        h2, c2 = cell_update(g2, g_mask2, c2, H2)

    # ---- classifier head + softmax on the last hidden state -----------------
    logits = (jnp.dot(h2.astype(jnp.bfloat16), w_fc_ref[...],
                      preferred_element_type=jnp.float32) + b_fc_ref[...])
    m = jnp.max(logits, axis=-1, keepdims=True)
    e = jnp.exp(logits - m)
    s = jnp.sum(e, axis=-1, keepdims=True)
    out_ref[...] = e / s          # exact division: runs once per call


def sequence_classifier_pallas(x, params):
    """x: (B, T, D) batch_first float32; returns (B, C) softmax probabilities."""
    (w_ih1, w_hh1, b1, w_ih2, w_hh2, b2, w_fc, b_fc) = params
    B, T, D = x.shape
    H1 = w_hh1.shape[0]
    H2 = w_hh2.shape[0]
    C = w_fc.shape[1]

    # Time-major layout for the kernel: one tiny (B*T*D*4 B) XLA transpose
    # outside the serial recurrence, so the kernel never does a per-step
    # sublane gather on the hoisted projection.
    x_tm = jnp.transpose(x, (1, 0, 2))          # (T, B, D)

    # bf16 MXU operands (accumulation stays f32 inside the kernel); biases
    # stay f32 and are added post-accumulation.
    bf = jnp.bfloat16
    w_ih1 = w_ih1.astype(bf)
    w_hh1 = w_hh1.astype(bf)
    w_ih2 = w_ih2.astype(bf)
    w_hh2 = w_hh2.astype(bf)
    w_fc = w_fc.astype(bf)

    # Split the batch across grid blocks only when it buys real parallelism
    # (multi-TensorCore parts, e.g. v7x).  On single-TC v5e/v6e the grid is a
    # serial loop, so one big block is strictly better.
    try:
        num_tc = int(getattr(jax.devices()[0], "num_cores", 1) or 1)
    except Exception:  # pragma: no cover - introspection is best-effort only
        num_tc = 1
    if num_tc > 1 and B % (8 * num_tc) == 0:
        BB = B // num_tc
    else:
        BB = B
    grid = (B // BB,)
    # VMEM footprint per block is ~T*BB*(D+4H1)*4 B plus replicated weights
    # (~100 KiB at these shapes) -- far below the scoped limit on v5e/v6e/v7x,
    # so no vmem_limit_bytes override is needed here.

    rep = lambda i: (0, 0)   # replicated weight/bias blocks

    return pl.pallas_call(
        _seq_classifier_kernel,
        out_shape=jax.ShapeDtypeStruct((B, C), jnp.float32),
        grid=grid,
        in_specs=[
            pl.BlockSpec((T, BB, D), lambda i: (0, i, 0)),
            pl.BlockSpec((D, 4 * H1), rep),
            pl.BlockSpec((H1, 4 * H1), rep),
            pl.BlockSpec((1, 4 * H1), rep),
            pl.BlockSpec((H1, 4 * H2), rep),
            pl.BlockSpec((H2, 4 * H2), rep),
            pl.BlockSpec((1, 4 * H2), rep),
            pl.BlockSpec((H2, C), rep),
            pl.BlockSpec((1, C), rep),
        ],
        out_specs=pl.BlockSpec((BB, C), lambda i: (i, 0)),
        compiler_params=pltpu.CompilerParams(
            dimension_semantics=("parallel",)),
    )(x_tm, w_ih1, w_hh1, b1, w_ih2, w_hh2, b2, w_fc, b_fc)


def sequence_classifier_ref(x, params):
    """Pure-JAX f32 reference mirroring the PyTorch forward (eval mode)."""
    (w_ih1, w_hh1, b1, w_ih2, w_hh2, b2, w_fc, b_fc) = params
    B, T, D = x.shape
    H1 = w_hh1.shape[0]
    H2 = w_hh2.shape[0]

    def cell(x_t, h, c, w_ih, w_hh, b, H):
        g = x_t @ w_ih + h @ w_hh + b
        i = jax.nn.sigmoid(g[:, :H])
        f = jax.nn.sigmoid(g[:, H:2 * H])
        gg = jnp.tanh(g[:, 2 * H:3 * H])
        o = jax.nn.sigmoid(g[:, 3 * H:])
        c = f * c + i * gg
        return o * jnp.tanh(c), c

    h1 = jnp.zeros((B, H1)); c1 = jnp.zeros((B, H1))
    h2 = jnp.zeros((B, H2)); c2 = jnp.zeros((B, H2))
    for t in range(T):
        h1, c1 = cell(x[:, t, :], h1, c1, w_ih1, w_hh1, b1, H1)
        h2, c2 = cell(h1, h2, c2, w_ih2, w_hh2, b2, H2)
    logits = h2 @ w_fc + b_fc
    return jax.nn.softmax(logits, axis=1)


def init_params(key, input_dim, hidden_dim_1, hidden_dim_2, num_classes):
    """Deterministic synthetic params, PyTorch-style uniform(-1/sqrt(H), 1/sqrt(H)).

    Weights are stored pre-transposed to (in_features, out_features); b1/b2 are
    the folded b_ih + b_hh biases of each LSTM layer.
    """
    ks = jax.random.split(key, 8)

    def unif(k, shape, H):
        bound = 1.0 / jnp.sqrt(jnp.float32(H))
        return jax.random.uniform(k, shape, jnp.float32, -bound, bound)

    # LSTM1
    w_ih1 = unif(ks[0], (input_dim, 4 * hidden_dim_1), hidden_dim_1)
    w_hh1 = unif(ks[1], (hidden_dim_1, 4 * hidden_dim_1), hidden_dim_1)
    b1 = unif(ks[2], (1, 4 * hidden_dim_1), hidden_dim_1)
    # LSTM2
    w_ih2 = unif(ks[3], (hidden_dim_1, 4 * hidden_dim_2), hidden_dim_2)
    w_hh2 = unif(ks[4], (hidden_dim_2, 4 * hidden_dim_2), hidden_dim_2)
    b2 = unif(ks[5], (1, 4 * hidden_dim_2), hidden_dim_2)
    # FC
    w_fc = unif(ks[6], (hidden_dim_2, num_classes), hidden_dim_2)
    b_fc = unif(ks[7], (1, num_classes), hidden_dim_2)
    return (w_ih1, w_hh1, b1, w_ih2, w_hh2, b2, w_fc, b_fc)


if __name__ == "__main__":
    # Small shapes consistent with the module; batch=8 fills one f32 sublane tile.
    B, T, D = 8, 8, 16
    H1, H2, C = 32, 32, 8

    key = jax.random.PRNGKey(0)
    k_x, k_p = jax.random.split(key)
    x = jax.random.normal(k_x, (B, T, D), jnp.float32)
    params = init_params(k_p, D, H1, H2, C)

    probs = jax.block_until_ready(sequence_classifier_pallas(x, params))
    ref = sequence_classifier_ref(x, params)

    assert probs.shape == (B, C)
    # Kernel feeds bf16 operands to the MXU (f32 accumulate), so compare with a
    # tolerance consistent with bf16 input rounding; the f32 reference is exact.
    assert jnp.allclose(probs, ref, atol=2e-2, rtol=2e-2), "mismatch vs reference"
    # Softmax uses exact division, so rows sum to 1 within f32 rounding.
    assert jnp.allclose(jnp.sum(probs, axis=1), 1.0, atol=1e-5), \
        "softmax rows must sum to ~1"

    print("KERNEL_OK")
</pallas_src>

<mosaic_0001>
module attributes {stable_mosaic.version = 11 : i64} {
  func.func @_seq_classifier_kernel(%arg0: i32, %arg1: memref<8x8x16xf32, #tpu.memory_space<vmem>>, %arg2: memref<16x128xbf16, #tpu.memory_space<vmem>>, %arg3: memref<32x128xbf16, #tpu.memory_space<vmem>>, %arg4: memref<1x128xf32, #tpu.memory_space<vmem>>, %arg5: memref<32x128xbf16, #tpu.memory_space<vmem>>, %arg6: memref<32x128xbf16, #tpu.memory_space<vmem>>, %arg7: memref<1x128xf32, #tpu.memory_space<vmem>>, %arg8: memref<32x8xbf16, #tpu.memory_space<vmem>>, %arg9: memref<1x8xf32, #tpu.memory_space<vmem>>, %arg10: memref<8x8xf32, #tpu.memory_space<vmem>>) attributes {dimension_semantics = [#tpu.dimension_semantics<parallel>], iteration_bounds = array<i64: 1>, scalar_prefetch = 0 : i64, scratch_operands = 0 : i64, tpu.core_type = #tpu.core_type<tc>, window_params = [{transform_indices = @transform_0, window_bounds = array<i64: 8, 8, 16>}, {pipeline_mode = #tpu.pipeline_mode<synchronous>, transform_indices = @transform_1, window_bounds = array<i64: 16, 128>}, {pipeline_mode = #tpu.pipeline_mode<synchronous>, transform_indices = @transform_2, window_bounds = array<i64: 32, 128>}, {pipeline_mode = #tpu.pipeline_mode<synchronous>, transform_indices = @transform_3, window_bounds = array<i64: 1, 128>}, {pipeline_mode = #tpu.pipeline_mode<synchronous>, transform_indices = @transform_4, window_bounds = array<i64: 32, 128>}, {pipeline_mode = #tpu.pipeline_mode<synchronous>, transform_indices = @transform_5, window_bounds = array<i64: 32, 128>}, {pipeline_mode = #tpu.pipeline_mode<synchronous>, transform_indices = @transform_6, window_bounds = array<i64: 1, 128>}, {pipeline_mode = #tpu.pipeline_mode<synchronous>, transform_indices = @transform_7, window_bounds = array<i64: 32, 8>}, {pipeline_mode = #tpu.pipeline_mode<synchronous>, transform_indices = @transform_8, window_bounds = array<i64: 1, 8>}, {transform_indices = @transform_9, window_bounds = array<i64: 8, 8>}]} {
    %c0 = arith.constant 0 : index
    %c0_0 = arith.constant 0 : index
    %0 = vector.load %arg3[%c0, %c0_0] : memref<32x128xbf16, #tpu.memory_space<vmem>>, vector<32x128xbf16>
    %c0_1 = arith.constant 0 : index
    %c0_2 = arith.constant 0 : index
    %1 = vector.load %arg5[%c0_1, %c0_2] : memref<32x128xbf16, #tpu.memory_space<vmem>>, vector<32x128xbf16>
    %c0_3 = arith.constant 0 : index
    %c0_4 = arith.constant 0 : index
    %2 = vector.load %arg6[%c0_3, %c0_4] : memref<32x128xbf16, #tpu.memory_space<vmem>>, vector<32x128xbf16>
    %c0_5 = arith.constant 0 : index
    %c0_6 = arith.constant 0 : index
    %c0_7 = arith.constant 0 : index
    %3 = vector.load %arg1[%c0_5, %c0_6, %c0_7] : memref<8x8x16xf32, #tpu.memory_space<vmem>>, vector<8x8x16xf32>
    %4 = vector.shape_cast %3 : vector<8x8x16xf32> to vector<64x16xf32>
    %5 = arith.truncf %4 : vector<64x16xf32> to vector<64x16xbf16>
    %c0_8 = arith.constant 0 : index
    %c0_9 = arith.constant 0 : index
    %6 = vector.load %arg2[%c0_8, %c0_9] : memref<16x128xbf16, #tpu.memory_space<vmem>>, vector<16x128xbf16>
    %cst = arith.constant dense<0.000000e+00> : vector<64x128xf32>
    %7 = tpu.matmul %5, %6, %cst {dimension_numbers = #tpu.dot_dimension_numbers<[1], [0], [0], [1], [0, 0, 1, 1], [], []>} : vector<64x16xbf16>, vector<16x128xbf16>, vector<64x128xf32> -> vector<64x128xf32>
    %c0_10 = arith.constant 0 : index
    %c0_11 = arith.constant 0 : index
    %8 = vector.load %arg4[%c0_10, %c0_11] : memref<1x128xf32, #tpu.memory_space<vmem>>, vector<1x128xf32>
    %9 = vector.broadcast %8 : vector<1x128xf32> to vector<64x128xf32>
    %10 = arith.addf %7, %9 : vector<64x128xf32>
    %11 = vector.shape_cast %10 : vector<64x128xf32> to vector<8x8x128xf32>
    %c0_12 = arith.constant 0 : index
    %c0_13 = arith.constant 0 : index
    %12 = vector.load %arg7[%c0_12, %c0_13] : memref<1x128xf32, #tpu.memory_space<vmem>>, vector<1x128xf32>
    %13 = vector.shape_cast %12 : vector<1x128xf32> to vector<1x128xf32>
    %14 = vector.broadcast %13 : vector<1x128xf32> to vector<8x128xf32>
    %15 = tpu.iota {dimensions = array<i32: 1>} : vector<8x128xi32>
    %c64_i32 = arith.constant 64 : i32
    %16 = vector.broadcast %c64_i32 : i32 to vector<8x128xi32>
    %17 = arith.cmpi sge, %15, %16 : vector<8x128xi32>
    %c96_i32 = arith.constant 96 : i32
    %18 = vector.broadcast %c96_i32 : i32 to vector<8x128xi32>
    %19 = arith.cmpi slt, %15, %18 : vector<8x128xi32>
    %20 = arith.andi %17, %19 : vector<8x128xi1>
    %21 = tpu.iota {dimensions = array<i32: 1>} : vector<8x128xi32>
    %c64_i32_14 = arith.constant 64 : i32
    %22 = vector.broadcast %c64_i32_14 : i32 to vector<8x128xi32>
    %23 = arith.cmpi sge, %21, %22 : vector<8x128xi32>
    %c96_i32_15 = arith.constant 96 : i32
    %24 = vector.broadcast %c96_i32_15 : i32 to vector<8x128xi32>
    %25 = arith.cmpi slt, %21, %24 : vector<8x128xi32>
    %26 = arith.andi %23, %25 : vector<8x128xi1>
    %cst_16 = arith.constant 0.000000e+00 : f32
    %27 = vector.broadcast %cst_16 : f32 to vector<8x32xf32>
    %cst_17 = arith.constant 0.000000e+00 : f32
    %28 = vector.broadcast %cst_17 : f32 to vector<8x32xf32>
    %cst_18 = arith.constant 0.000000e+00 : f32
    %29 = vector.broadcast %cst_18 : f32 to vector<8x32xf32>
    %cst_19 = arith.constant 0.000000e+00 : f32
    %30 = vector.broadcast %cst_19 : f32 to vector<8x32xf32>
    %31 = arith.truncf %29 : vector<8x32xf32> to vector<8x32xbf16>
    %cst_20 = arith.constant dense<0.000000e+00> : vector<8x128xf32>
    %32 = tpu.matmul %31, %2, %cst_20 {dimension_numbers = #tpu.dot_dimension_numbers<[1], [0], [0], [1], [0, 0, 1, 1], [], []>} : vector<8x32xbf16>, vector<32x128xbf16>, vector<8x128xf32> -> vector<8x128xf32>
    %33 = vector.extract_strided_slice %11 {offsets = [0, 0, 0], sizes = [1, 8, 128], strides = [1, 1, 1]} : vector<8x8x128xf32> to vector<1x8x128xf32>
    %34 = vector.shape_cast %33 : vector<1x8x128xf32> to vector<8x128xf32>
    %35 = arith.truncf %27 : vector<8x32xf32> to vector<8x32xbf16>
    %cst_21 = arith.constant dense<0.000000e+00> : vector<8x128xf32>
    %36 = tpu.matmul %35, %0, %cst_21 {dimension_numbers = #tpu.dot_dimension_numbers<[1], [0], [0], [1], [0, 0, 1, 1], [], []>} : vector<8x32xbf16>, vector<32x128xbf16>, vector<8x128xf32> -> vector<8x128xf32>
    %37 = arith.addf %34, %36 : vector<8x128xf32>
    %cst_22 = arith.constant 5.000000e-01 : f32
    %38 = vector.broadcast %cst_22 : f32 to vector<8x128xf32>
    %39 = arith.mulf %38, %37 : vector<8x128xf32>
    %40 = arith.select %20, %37, %39 : vector<8x128xi1>, vector<8x128xf32>
    %41 = math.tanh %40 : vector<8x128xf32>
    %cst_23 = arith.constant 5.000000e-01 : f32
    %42 = vector.broadcast %cst_23 : f32 to vector<8x128xf32>
    %43 = arith.mulf %42, %41 : vector<8x128xf32>
    %cst_24 = arith.constant 5.000000e-01 : f32
    %44 = vector.broadcast %cst_24 : f32 to vector<8x128xf32>
    %45 = arith.addf %43, %44 : vector<8x128xf32>
    %46 = arith.select %20, %41, %45 : vector<8x128xi1>, vector<8x128xf32>
    %47 = vector.extract_strided_slice %46 {offsets = [0, 0], sizes = [8, 32], strides = [1, 1]} : vector<8x128xf32> to vector<8x32xf32>
    %48 = vector.extract_strided_slice %46 {offsets = [0, 32], sizes = [8, 32], strides = [1, 1]} : vector<8x128xf32> to vector<8x32xf32>
    %49 = vector.extract_strided_slice %46 {offsets = [0, 64], sizes = [8, 32], strides = [1, 1]} : vector<8x128xf32> to vector<8x32xf32>
    %50 = vector.extract_strided_slice %46 {offsets = [0, 96], sizes = [8, 32], strides = [1, 1]} : vector<8x128xf32> to vector<8x32xf32>
    %51 = arith.mulf %48, %28 : vector<8x32xf32>
    %52 = arith.mulf %47, %49 : vector<8x32xf32>
    %53 = arith.addf %51, %52 : vector<8x32xf32>
    %54 = math.tanh %53 : vector<8x32xf32>
    %55 = arith.mulf %50, %54 : vector<8x32xf32>
    %56 = arith.truncf %55 : vector<8x32xf32> to vector<8x32xbf16>
    %cst_25 = arith.constant dense<0.000000e+00> : vector<8x128xf32>
    %57 = tpu.matmul %56, %1, %cst_25 {dimension_numbers = #tpu.dot_dimension_numbers<[1], [0], [0], [1], [0, 0, 1, 1], [], []>} : vector<8x32xbf16>, vector<32x128xbf16>, vector<8x128xf32> -> vector<8x128xf32>
    %58 = arith.addf %57, %32 : vector<8x128xf32>
    %59 = arith.addf %58, %14 : vector<8x128xf32>
    %cst_26 = arith.constant 5.000000e-01 : f32
    %60 = vector.broadcast %cst_26 : f32 to vector<8x128xf32>
    %61 = arith.mulf %60, %59 : vector<8x128xf32>
    %62 = arith.select %26, %59, %61 : vector<8x128xi1>, vector<8x128xf32>
    %63 = math.tanh %62 : vector<8x128xf32>
    %cst_27 = arith.constant 5.000000e-01 : f32
    %64 = vector.broadcast %cst_27 : f32 to vector<8x128xf32>
    %65 = arith.mulf %64, %63 : vector<8x128xf32>
    %cst_28 = arith.constant 5.000000e-01 : f32
    %66 = vector.broadcast %cst_28 : f32 to vector<8x128xf32>
    %67 = arith.addf %65, %66 : vector<8x128xf32>
    %68 = arith.select %26, %63, %67 : vector<8x128xi1>, vector<8x128xf32>
    %69 = vector.extract_strided_slice %68 {offsets = [0, 0], sizes = [8, 32], strides = [1, 1]} : vector<8x128xf32> to vector<8x32xf32>
    %70 = vector.extract_strided_slice %68 {offsets = [0, 32], sizes = [8, 32], strides = [1, 1]} : vector<8x128xf32> to vector<8x32xf32>
    %71 = vector.extract_strided_slice %68 {offsets = [0, 64], sizes = [8, 32], strides = [1, 1]} : vector<8x128xf32> to vector<8x32xf32>
    %72 = vector.extract_strided_slice %68 {offsets = [0, 96], sizes = [8, 32], strides = [1, 1]} : vector<8x128xf32> to vector<8x32xf32>
    %73 = arith.mulf %70, %30 : vector<8x32xf32>
    %74 = arith.mulf %69, %71 : vector<8x32xf32>
    %75 = arith.addf %73, %74 : vector<8x32xf32>
    %76 = math.tanh %75 : vector<8x32xf32>
    %77 = arith.mulf %72, %76 : vector<8x32xf32>
    %78 = arith.truncf %77 : vector<8x32xf32> to vector<8x32xbf16>
    %cst_29 = arith.constant dense<0.000000e+00> : vector<8x128xf32>
    %79 = tpu.matmul %78, %2, %cst_29 {dimension_numbers = #tpu.dot_dimension_numbers<[1], [0], [0], [1], [0, 0, 1, 1], [], []>} : vector<8x32xbf16>, vector<32x128xbf16>, vector<8x128xf32> -> vector<8x128xf32>
    %80 = vector.extract_strided_slice %11 {offsets = [1, 0, 0], sizes = [1, 8, 128], strides = [1, 1, 1]} : vector<8x8x128xf32> to vector<1x8x128xf32>
    %81 = vector.shape_cast %80 : vector<1x8x128xf32> to vector<8x128xf32>
    %82 = arith.truncf %55 : vector<8x32xf32> to vector<8x32xbf16>
    %cst_30 = arith.constant dense<0.000000e+00> : vector<8x128xf32>
    %83 = tpu.matmul %82, %0, %cst_30 {dimension_numbers = #tpu.dot_dimension_numbers<[1], [0], [0], [1], [0, 0, 1, 1], [], []>} : vector<8x32xbf16>, vector<32x128xbf16>, vector<8x128xf32> -> vector<8x128xf32>
    %84 = arith.addf %81, %83 : vector<8x128xf32>
    %cst_31 = arith.constant 5.000000e-01 : f32
    %85 = vector.broadcast %cst_31 : f32 to vector<8x128xf32>
    %86 = arith.mulf %85, %84 : vector<8x128xf32>
    %87 = arith.select %20, %84, %86 : vector<8x128xi1>, vector<8x128xf32>
    %88 = math.tanh %87 : vector<8x128xf32>
    %cst_32 = arith.constant 5.000000e-01 : f32
    %89 = vector.broadcast %cst_32 : f32 to vector<8x128xf32>
    %90 = arith.mulf %89, %88 : vector<8x128xf32>
    %cst_33 = arith.constant 5.000000e-01 : f32
    %91 = vector.broadcast %cst_33 : f32 to vector<8x128xf32>
    %92 = arith.addf %90, %91 : vector<8x128xf32>
    %93 = arith.select %20, %88, %92 : vector<8x128xi1>, vector<8x128xf32>
    %94 = vector.extract_strided_slice %93 {offsets = [0, 0], sizes = [8, 32], strides = [1, 1]} : vector<8x128xf32> to vector<8x32xf32>
    %95 = vector.extract_strided_slice %93 {offsets = [0, 32], sizes = [8, 32], strides = [1, 1]} : vector<8x128xf32> to vector<8x32xf32>
    %96 = vector.extract_strided_slice %93 {offsets = [0, 64], sizes = [8, 32], strides = [1, 1]} : vector<8x128xf32> to vector<8x32xf32>
    %97 = vector.extract_strided_slice %93 {offsets = [0, 96], sizes = [8, 32], strides = [1, 1]} : vector<8x128xf32> to vector<8x32xf32>
    %98 = arith.mulf %95, %53 : vector<8x32xf32>
    %99 = arith.mulf %94, %96 : vector<8x32xf32>
    %100 = arith.addf %98, %99 : vector<8x32xf32>
    %101 = math.tanh %100 : vector<8x32xf32>
    %102 = arith.mulf %97, %101 : vector<8x32xf32>
    %103 = arith.truncf %102 : vector<8x32xf32> to vector<8x32xbf16>
    %cst_34 = arith.constant dense<0.000000e+00> : vector<8x128xf32>
    %104 = tpu.matmul %103, %1, %cst_34 {dimension_numbers = #tpu.dot_dimension_numbers<[1], [0], [0], [1], [0, 0, 1, 1], [], []>} : vector<8x32xbf16>, vector<32x128xbf16>, vector<8x128xf32> -> vector<8x128xf32>
    %105 = arith.addf %104, %79 : vector<8x128xf32>
    %106 = arith.addf %105, %14 : vector<8x128xf32>
    %cst_35 = arith.constant 5.000000e-01 : f32
    %107 = vector.broadcast %cst_35 : f32 to vector<8x128xf32>
    %108 = arith.mulf %107, %106 : vector<8x128xf32>
    %109 = arith.select %26, %106, %108 : vector<8x128xi1>, vector<8x128xf32>
    %110 = math.tanh %109 : vector<8x128xf32>
    %cst_36 = arith.constant 5.000000e-01 : f32
    %111 = vector.broadcast %cst_36 : f32 to vector<8x128xf32>
    %112 = arith.mulf %111, %110 : vector<8x128xf32>
    %cst_37 = arith.constant 5.000000e-01 : f32
    %113 = vector.broadcast %cst_37 : f32 to vector<8x128xf32>
    %114 = arith.addf %112, %113 : vector<8x128xf32>
    %115 = arith.select %26, %110, %114 : vector<8x128xi1>, vector<8x128xf32>
    %116 = vector.extract_strided_slice %115 {offsets = [0, 0], sizes = [8, 32], strides = [1, 1]} : vector<8x128xf32> to vector<8x32xf32>
    %117 = vector.extract_strided_slice %115 {offsets = [0, 32], sizes = [8, 32], strides = [1, 1]} : vector<8x128xf32> to vector<8x32xf32>
    %118 = vector.extract_strided_slice %115 {offsets = [0, 64], sizes = [8, 32], strides = [1, 1]} : vector<8x128xf32> to vector<8x32xf32>
    %119 = vector.extract_strided_slice %115 {offsets = [0, 96], sizes = [8, 32], strides = [1, 1]} : vector<8x128xf32> to vector<8x32xf32>
    %120 = arith.mulf %117, %75 : vector<8x32xf32>
    %121 = arith.mulf %116, %118 : vector<8x32xf32>
    %122 = arith.addf %120, %121 : vector<8x32xf32>
    %123 = math.tanh %122 : vector<8x32xf32>
    %124 = arith.mulf %119, %123 : vector<8x32xf32>
    %125 = arith.truncf %124 : vector<8x32xf32> to vector<8x32xbf16>
    %cst_38 = arith.constant dense<0.000000e+00> : vector<8x128xf32>
    %126 = tpu.matmul %125, %2, %cst_38 {dimension_numbers = #tpu.dot_dimension_numbers<[1], [0], [0], [1], [0, 0, 1, 1], [], []>} : vector<8x32xbf16>, vector<32x128xbf16>, vector<8x128xf32> -> vector<8x128xf32>
    %127 = vector.extract_strided_slice %11 {offsets = [2, 0, 0], sizes = [1, 8, 128], strides = [1, 1, 1]} : vector<8x8x128xf32> to vector<1x8x128xf32>
    %128 = vector.shape_cast %127 : vector<1x8x128xf32> to vector<8x128xf32>
    %129 = arith.truncf %102 : vector<8x32xf32> to vector<8x32xbf16>
    %cst_39 = arith.constant dense<0.000000e+00> : vector<8x128xf32>
    %130 = tpu.matmul %129, %0, %cst_39 {dimension_numbers = #tpu.dot_dimension_numbers<[1], [0], [0], [1], [0, 0, 1, 1], [], []>} : vector<8x32xbf16>, vector<32x128xbf16>, vector<8x128xf32> -> vector<8x128xf32>
    %131 = arith.addf %128, %130 : vector<8x128xf32>
    %cst_40 = arith.constant 5.000000e-01 : f32
    %132 = vector.broadcast %cst_40 : f32 to vector<8x128xf32>
    %133 = arith.mulf %132, %131 : vector<8x128xf32>
    %134 = arith.select %20, %131, %133 : vector<8x128xi1>, vector<8x128xf32>
    %135 = math.tanh %134 : vector<8x128xf32>
    %cst_41 = arith.constant 5.000000e-01 : f32
    %136 = vector.broadcast %cst_41 : f32 to vector<8x128xf32>
    %137 = arith.mulf %136, %135 : vector<8x128xf32>
    %cst_42 = arith.constant 5.000000e-01 : f32
    %138 = vector.broadcast %cst_42 : f32 to vector<8x128xf32>
    %139 = arith.addf %137, %138 : vector<8x128xf32>
    %140 = arith.select %20, %135, %139 : vector<8x128xi1>, vector<8x128xf32>
    %141 = vector.extract_strided_slice %140 {offsets = [0, 0], sizes = [8, 32], strides = [1, 1]} : vector<8x128xf32> to vector<8x32xf32>
    %142 = vector.extract_strided_slice %140 {offsets = [0, 32], sizes = [8, 32], strides = [1, 1]} : vector<8x128xf32> to vector<8x32xf32>
    %143 = vector.extract_strided_slice %140 {offsets = [0, 64], sizes = [8, 32], strides = [1, 1]} : vector<8x128xf32> to vector<8x32xf32>
    %144 = vector.extract_strided_slice %140 {offsets = [0, 96], sizes = [8, 32], strides = [1, 1]} : vector<8x128xf32> to vector<8x32xf32>
    %145 = arith.mulf %142, %100 : vector<8x32xf32>
    %146 = arith.mulf %141, %143 : vector<8x32xf32>
    %147 = arith.addf %145, %146 : vector<8x32xf32>
    %148 = math.tanh %147 : vector<8x32xf32>
    %149 = arith.mulf %144, %148 : vector<8x32xf32>
    %150 = arith.truncf %149 : vector<8x32xf32> to vector<8x32xbf16>
    %cst_43 = arith.constant dense<0.000000e+00> : vector<8x128xf32>
    %151 = tpu.matmul %150, %1, %cst_43 {dimension_numbers = #tpu.dot_dimension_numbers<[1], [0], [0], [1], [0, 0, 1, 1], [], []>} : vector<8x32xbf16>, vector<32x128xbf16>, vector<8x128xf32> -> vector<8x128xf32>
    %152 = arith.addf %151, %126 : vector<8x128xf32>
    %153 = arith.addf %152, %14 : vector<8x128xf32>
    %cst_44 = arith.constant 5.000000e-01 : f32
    %154 = vector.broadcast %cst_44 : f32 to vector<8x128xf32>
    %155 = arith.mulf %154, %153 : vector<8x128xf32>
    %156 = arith.select %26, %153, %155 : vector<8x128xi1>, vector<8x128xf32>
    %157 = math.tanh %156 : vector<8x128xf32>
    %cst_45 = arith.constant 5.000000e-01 : f32
    %158 = vector.broadcast %cst_45 : f32 to vector<8x128xf32>
    %159 = arith.mulf %158, %157 : vector<8x128xf32>
    %cst_46 = arith.constant 5.000000e-01 : f32
    %160 = vector.broadcast %cst_46 : f32 to vector<8x128xf32>
    %161 = arith.addf %159, %160 : vector<8x128xf32>
    %162 = arith.select %26, %157, %161 : vector<8x128xi1>, vector<8x128xf32>
    %163 = vector.extract_strided_slice %162 {offsets = [0, 0], sizes = [8, 32], strides = [1, 1]} : vector<8x128xf32> to vector<8x32xf32>
    %164 = vector.extract_strided_slice %162 {offsets = [0, 32], sizes = [8, 32], strides = [1, 1]} : vector<8x128xf32> to vector<8x32xf32>
    %165 = vector.extract_strided_slice %162 {offsets = [0, 64], sizes = [8, 32], strides = [1, 1]} : vector<8x128xf32> to vector<8x32xf32>
    %166 = vector.extract_strided_slice %162 {offsets = [0, 96], sizes = [8, 32], strides = [1, 1]} : vector<8x128xf32> to vector<8x32xf32>
    %167 = arith.mulf %164, %122 : vector<8x32xf32>
    %168 = arith.mulf %163, %165 : vector<8x32xf32>
    %169 = arith.addf %167, %168 : vector<8x32xf32>
    %170 = math.tanh %169 : vector<8x32xf32>
    %171 = arith.mulf %166, %170 : vector<8x32xf32>
    %172 = arith.truncf %171 : vector<8x32xf32> to vector<8x32xbf16>
    %cst_47 = arith.constant dense<0.000000e+00> : vector<8x128xf32>
    %173 = tpu.matmul %172, %2, %cst_47 {dimension_numbers = #tpu.dot_dimension_numbers<[1], [0], [0], [1], [0, 0, 1, 1], [], []>} : vector<8x32xbf16>, vector<32x128xbf16>, vector<8x128xf32> -> vector<8x128xf32>
    %174 = vector.extract_strided_slice %11 {offsets = [3, 0, 0], sizes = [1, 8, 128], strides = [1, 1, 1]} : vector<8x8x128xf32> to vector<1x8x128xf32>
    %175 = vector.shape_cast %174 : vector<1x8x128xf32> to vector<8x128xf32>
    %176 = arith.truncf %149 : vector<8x32xf32> to vector<8x32xbf16>
    %cst_48 = arith.constant dense<0.000000e+00> : vector<8x128xf32>
    %177 = tpu.matmul %176, %0, %cst_48 {dimension_numbers = #tpu.dot_dimension_numbers<[1], [0], [0], [1], [0, 0, 1, 1], [], []>} : vector<8x32xbf16>, vector<32x128xbf16>, vector<8x128xf32> -> vector<8x128xf32>
    %178 = arith.addf %175, %177 : vector<8x128xf32>
    %cst_49 = arith.constant 5.000000e-01 : f32
    %179 = vector.broadcast %cst_49 : f32 to vector<8x128xf32>
    %180 = arith.mulf %179, %178 : vector<8x128xf32>
    %181 = arith.select %20, %178, %180 : vector<8x128xi1>, vector<8x128xf32>
    %182 = math.tanh %181 : vector<8x128xf32>
    %cst_50 = arith.constant 5.000000e-01 : f32
    %183 = vector.broadcast %cst_50 : f32 to vector<8x128xf32>
    %184 = arith.mulf %183, %182 : vector<8x128xf32>
    %cst_51 = arith.constant 5.000000e-01 : f32
    %185 = vector.broadcast %cst_51 : f32 to vector<8x128xf32>
    %186 = arith.addf %184, %185 : vector<8x128xf32>
    %187 = arith.select %20, %182, %186 : vector<8x128xi1>, vector<8x128xf32>
    %188 = vector.extract_strided_slice %187 {offsets = [0, 0], sizes = [8, 32], strides = [1, 1]} : vector<8x128xf32> to vector<8x32xf32>
    %189 = vector.extract_strided_slice %187 {offsets = [0, 32], sizes = [8, 32], strides = [1, 1]} : vector<8x128xf32> to vector<8x32xf32>
    %190 = vector.extract_strided_slice %187 {offsets = [0, 64], sizes = [8, 32], strides = [1, 1]} : vector<8x128xf32> to vector<8x32xf32>
    %191 = vector.extract_strided_slice %187 {offsets = [0, 96], sizes = [8, 32], strides = [1, 1]} : vector<8x128xf32> to vector<8x32xf32>
    %192 = arith.mulf %189, %147 : vector<8x32xf32>
    %193 = arith.mulf %188, %190 : vector<8x32xf32>
    %194 = arith.addf %192, %193 : vector<8x32xf32>
    %195 = math.tanh %194 : vector<8x32xf32>
    %196 = arith.mulf %191, %195 : vector<8x32xf32>
    %197 = arith.truncf %196 : vector<8x32xf32> to vector<8x32xbf16>
    %cst_52 = arith.constant dense<0.000000e+00> : vector<8x128xf32>
    %198 = tpu.matmul %197, %1, %cst_52 {dimension_numbers = #tpu.dot_dimension_numbers<[1], [0], [0], [1], [0, 0, 1, 1], [], []>} : vector<8x32xbf16>, vector<32x128xbf16>, vector<8x128xf32> -> vector<8x128xf32>
    %199 = arith.addf %198, %173 : vector<8x128xf32>
    %200 = arith.addf %199, %14 : vector<8x128xf32>
    %cst_53 = arith.constant 5.000000e-01 : f32
    %201 = vector.broadcast %cst_53 : f32 to vector<8x128xf32>
    %202 = arith.mulf %201, %200 : vector<8x128xf32>
    %203 = arith.select %26, %200, %202 : vector<8x128xi1>, vector<8x128xf32>
    %204 = math.tanh %203 : vector<8x128xf32>
    %cst_54 = arith.constant 5.000000e-01 : f32
    %205 = vector.broadcast %cst_54 : f32 to vector<8x128xf32>
    %206 = arith.mulf %205, %204 : vector<8x128xf32>
    %cst_55 = arith.constant 5.000000e-01 : f32
    %207 = vector.broadcast %cst_55 : f32 to vector<8x128xf32>
    %208 = arith.addf %206, %207 : vector<8x128xf32>
    %209 = arith.select %26, %204, %208 : vector<8x128xi1>, vector<8x128xf32>
    %210 = vector.extract_strided_slice %209 {offsets = [0, 0], sizes = [8, 32], strides = [1, 1]} : vector<8x128xf32> to vector<8x32xf32>
    %211 = vector.extract_strided_slice %209 {offsets = [0, 32], sizes = [8, 32], strides = [1, 1]} : vector<8x128xf32> to vector<8x32xf32>
    %212 = vector.extract_strided_slice %209 {offsets = [0, 64], sizes = [8, 32], strides = [1, 1]} : vector<8x128xf32> to vector<8x32xf32>
    %213 = vector.extract_strided_slice %209 {offsets = [0, 96], sizes = [8, 32], strides = [1, 1]} : vector<8x128xf32> to vector<8x32xf32>
    %214 = arith.mulf %211, %169 : vector<8x32xf32>
    %215 = arith.mulf %210, %212 : vector<8x32xf32>
    %216 = arith.addf %214, %215 : vector<8x32xf32>
    %217 = math.tanh %216 : vector<8x32xf32>
    %218 = arith.mulf %213, %217 : vector<8x32xf32>
    %219 = arith.truncf %218 : vector<8x32xf32> to vector<8x32xbf16>
    %cst_56 = arith.constant dense<0.000000e+00> : vector<8x128xf32>
    %220 = tpu.matmul %219, %2, %cst_56 {dimension_numbers = #tpu.dot_dimension_numbers<[1], [0], [0], [1], [0, 0, 1, 1], [], []>} : vector<8x32xbf16>, vector<32x128xbf16>, vector<8x128xf32> -> vector<8x128xf32>
    %221 = vector.extract_strided_slice %11 {offsets = [4, 0, 0], sizes = [1, 8, 128], strides = [1, 1, 1]} : vector<8x8x128xf32> to vector<1x8x128xf32>
    %222 = vector.shape_cast %221 : vector<1x8x128xf32> to vector<8x128xf32>
    %223 = arith.truncf %196 : vector<8x32xf32> to vector<8x32xbf16>
    %cst_57 = arith.constant dense<0.000000e+00> : vector<8x128xf32>
    %224 = tpu.matmul %223, %0, %cst_57 {dimension_numbers = #tpu.dot_dimension_numbers<[1], [0], [0], [1], [0, 0, 1, 1], [], []>} : vector<8x32xbf16>, vector<32x128xbf16>, vector<8x128xf32> -> vector<8x128xf32>
    %225 = arith.addf %222, %224 : vector<8x128xf32>
    %cst_58 = arith.constant 5.000000e-01 : f32
    %226 = vector.broadcast %cst_58 : f32 to vector<8x128xf32>
    %227 = arith.mulf %226, %225 : vector<8x128xf32>
    %228 = arith.select %20, %225, %227 : vector<8x128xi1>, vector<8x128xf32>
    %229 = math.tanh %228 : vector<8x128xf32>
    %cst_59 = arith.constant 5.000000e-01 : f32
    %230 = vector.broadcast %cst_59 : f32 to vector<8x128xf32>
    %231 = arith.mulf %230, %229 : vector<8x128xf32>
    %cst_60 = arith.constant 5.000000e-01 : f32
    %232 = vector.broadcast %cst_60 : f32 to vector<8x128xf32>
    %233 = arith.addf %231, %232 : vector<8x128xf32>
    %234 = arith.select %20, %229, %233 : vector<8x128xi1>, vector<8x128xf32>
    %235 = vector.extract_strided_slice %234 {offsets = [0, 0], sizes = [8, 32], strides = [1, 1]} : vector<8x128xf32> to vector<8x32xf32>
    %236 = vector.extract_strided_slice %234 {offsets = [0, 32], sizes = [8, 32], strides = [1, 1]} : vector<8x128xf32> to vector<8x32xf32>
    %237 = vector.extract_strided_slice %234 {offsets = [0, 64], sizes = [8, 32], strides = [1, 1]} : vector<8x128xf32> to vector<8x32xf32>
    %238 = vector.extract_strided_slice %234 {offsets = [0, 96], sizes = [8, 32], strides = [1, 1]} : vector<8x128xf32> to vector<8x32xf32>
    %239 = arith.mulf %236, %194 : vector<8x32xf32>
    %240 = arith.mulf %235, %237 : vector<8x32xf32>
    %241 = arith.addf %239, %240 : vector<8x32xf32>
    %242 = math.tanh %241 : vector<8x32xf32>
    %243 = arith.mulf %238, %242 : vector<8x32xf32>
    %244 = arith.truncf %243 : vector<8x32xf32> to vector<8x32xbf16>
    %cst_61 = arith.constant dense<0.000000e+00> : vector<8x128xf32>
    %245 = tpu.matmul %244, %1, %cst_61 {dimension_numbers = #tpu.dot_dimension_numbers<[1], [0], [0], [1], [0, 0, 1, 1], [], []>} : vector<8x32xbf16>, vector<32x128xbf16>, vector<8x128xf32> -> vector<8x128xf32>
    %246 = arith.addf %245, %220 : vector<8x128xf32>
    %247 = arith.addf %246, %14 : vector<8x128xf32>
    %cst_62 = arith.constant 5.000000e-01 : f32
    %248 = vector.broadcast %cst_62 : f32 to vector<8x128xf32>
    %249 = arith.mulf %248, %247 : vector<8x128xf32>
    %250 = arith.select %26, %247, %249 : vector<8x128xi1>, vector<8x128xf32>
    %251 = math.tanh %250 : vector<8x128xf32>
    %cst_63 = arith.constant 5.000000e-01 : f32
    %252 = vector.broadcast %cst_63 : f32 to vector<8x128xf32>
    %253 = arith.mulf %252, %251 : vector<8x128xf32>
    %cst_64 = arith.constant 5.000000e-01 : f32
    %254 = vector.broadcast %cst_64 : f32 to vector<8x128xf32>
    %255 = arith.addf %253, %254 : vector<8x128xf32>
    %256 = arith.select %26, %251, %255 : vector<8x128xi1>, vector<8x128xf32>
    %257 = vector.extract_strided_slice %256 {offsets = [0, 0], sizes = [8, 32], strides = [1, 1]} : vector<8x128xf32> to vector<8x32xf32>
    %258 = vector.extract_strided_slice %256 {offsets = [0, 32], sizes = [8, 32], strides = [1, 1]} : vector<8x128xf32> to vector<8x32xf32>
    %259 = vector.extract_strided_slice %256 {offsets = [0, 64], sizes = [8, 32], strides = [1, 1]} : vector<8x128xf32> to vector<8x32xf32>
    %260 = vector.extract_strided_slice %256 {offsets = [0, 96], sizes = [8, 32], strides = [1, 1]} : vector<8x128xf32> to vector<8x32xf32>
    %261 = arith.mulf %258, %216 : vector<8x32xf32>
    %262 = arith.mulf %257, %259 : vector<8x32xf32>
    %263 = arith.addf %261, %262 : vector<8x32xf32>
    %264 = math.tanh %263 : vector<8x32xf32>
    %265 = arith.mulf %260, %264 : vector<8x32xf32>
    %266 = arith.truncf %265 : vector<8x32xf32> to vector<8x32xbf16>
    %cst_65 = arith.constant dense<0.000000e+00> : vector<8x128xf32>
    %267 = tpu.matmul %266, %2, %cst_65 {dimension_numbers = #tpu.dot_dimension_numbers<[1], [0], [0], [1], [0, 0, 1, 1], [], []>} : vector<8x32xbf16>, vector<32x128xbf16>, vector<8x128xf32> -> vector<8x128xf32>
    %268 = vector.extract_strided_slice %11 {offsets = [5, 0, 0], sizes = [1, 8, 128], strides = [1, 1, 1]} : vector<8x8x128xf32> to vector<1x8x128xf32>
    %269 = vector.shape_cast %268 : vector<1x8x128xf32> to vector<8x128xf32>
    %270 = arith.truncf %243 : vector<8x32xf32> to vector<8x32xbf16>
    %cst_66 = arith.constant dense<0.000000e+00> : vector<8x128xf32>
    %271 = tpu.matmul %270, %0, %cst_66 {dimension_numbers = #tpu.dot_dimension_numbers<[1], [0], [0], [1], [0, 0, 1, 1], [], []>} : vector<8x32xbf16>, vector<32x128xbf16>, vector<8x128xf32> -> vector<8x128xf32>
    %272 = arith.addf %269, %271 : vector<8x128xf32>
    %cst_67 = arith.constant 5.000000e-01 : f32
    %273 = vector.broadcast %cst_67 : f32 to vector<8x128xf32>
    %274 = arith.mulf %273, %272 : vector<8x128xf32>
    %275 = arith.select %20, %272, %274 : vector<8x128xi1>, vector<8x128xf32>
    %276 = math.tanh %275 : vector<8x128xf32>
    %cst_68 = arith.constant 5.000000e-01 : f32
    %277 = vector.broadcast %cst_68 : f32 to vector<8x128xf32>
    %278 = arith.mulf %277, %276 : vector<8x128xf32>
    %cst_69 = arith.constant 5.000000e-01 : f32
    %279 = vector.broadcast %cst_69 : f32 to vector<8x128xf32>
    %280 = arith.addf %278, %279 : vector<8x128xf32>
    %281 = arith.select %20, %276, %280 : vector<8x128xi1>, vector<8x128xf32>
    %282 = vector.extract_strided_slice %281 {offsets = [0, 0], sizes = [8, 32], strides = [1, 1]} : vector<8x128xf32> to vector<8x32xf32>
    %283 = vector.extract_strided_slice %281 {offsets = [0, 32], sizes = [8, 32], strides = [1, 1]} : vector<8x128xf32> to vector<8x32xf32>
    %284 = vector.extract_strided_slice %281 {offsets = [0, 64], sizes = [8, 32], strides = [1, 1]} : vector<8x128xf32> to vector<8x32xf32>
    %285 = vector.extract_strided_slice %281 {offsets = [0, 96], sizes = [8, 32], strides = [1, 1]} : vector<8x128xf32> to vector<8x32xf32>
    %286 = arith.mulf %283, %241 : vector<8x32xf32>
    %287 = arith.mulf %282, %284 : vector<8x32xf32>
    %288 = arith.addf %286, %287 : vector<8x32xf32>
    %289 = math.tanh %288 : vector<8x32xf32>
    %290 = arith.mulf %285, %289 : vector<8x32xf32>
    %291 = arith.truncf %290 : vector<8x32xf32> to vector<8x32xbf16>
    %cst_70 = arith.constant dense<0.000000e+00> : vector<8x128xf32>
    %292 = tpu.matmul %291, %1, %cst_70 {dimension_numbers = #tpu.dot_dimension_numbers<[1], [0], [0], [1], [0, 0, 1, 1], [], []>} : vector<8x32xbf16>, vector<32x128xbf16>, vector<8x128xf32> -> vector<8x128xf32>
    %293 = arith.addf %292, %267 : vector<8x128xf32>
    %294 = arith.addf %293, %14 : vector<8x128xf32>
    %cst_71 = arith.constant 5.000000e-01 : f32
    %295 = vector.broadcast %cst_71 : f32 to vector<8x128xf32>
    %296 = arith.mulf %295, %294 : vector<8x128xf32>
    %297 = arith.select %26, %294, %296 : vector<8x128xi1>, vector<8x128xf32>
    %298 = math.tanh %297 : vector<8x128xf32>
    %cst_72 = arith.constant 5.000000e-01 : f32
    %299 = vector.broadcast %cst_72 : f32 to vector<8x128xf32>
    %300 = arith.mulf %299, %298 : vector<8x128xf32>
    %cst_73 = arith.constant 5.000000e-01 : f32
    %301 = vector.broadcast %cst_73 : f32 to vector<8x128xf32>
    %302 = arith.addf %300, %301 : vector<8x128xf32>
    %303 = arith.select %26, %298, %302 : vector<8x128xi1>, vector<8x128xf32>
    %304 = vector.extract_strided_slice %303 {offsets = [0, 0], sizes = [8, 32], strides = [1, 1]} : vector<8x128xf32> to vector<8x32xf32>
    %305 = vector.extract_strided_slice %303 {offsets = [0, 32], sizes = [8, 32], strides = [1, 1]} : vector<8x128xf32> to vector<8x32xf32>
    %306 = vector.extract_strided_slice %303 {offsets = [0, 64], sizes = [8, 32], strides = [1, 1]} : vector<8x128xf32> to vector<8x32xf32>
    %307 = vector.extract_strided_slice %303 {offsets = [0, 96], sizes = [8, 32], strides = [1, 1]} : vector<8x128xf32> to vector<8x32xf32>
    %308 = arith.mulf %305, %263 : vector<8x32xf32>
    %309 = arith.mulf %304, %306 : vector<8x32xf32>
    %310 = arith.addf %308, %309 : vector<8x32xf32>
    %311 = math.tanh %310 : vector<8x32xf32>
    %312 = arith.mulf %307, %311 : vector<8x32xf32>
    %313 = arith.truncf %312 : vector<8x32xf32> to vector<8x32xbf16>
    %cst_74 = arith.constant dense<0.000000e+00> : vector<8x128xf32>
    %314 = tpu.matmul %313, %2, %cst_74 {dimension_numbers = #tpu.dot_dimension_numbers<[1], [0], [0], [1], [0, 0, 1, 1], [], []>} : vector<8x32xbf16>, vector<32x128xbf16>, vector<8x128xf32> -> vector<8x128xf32>
    %315 = vector.extract_strided_slice %11 {offsets = [6, 0, 0], sizes = [1, 8, 128], strides = [1, 1, 1]} : vector<8x8x128xf32> to vector<1x8x128xf32>
    %316 = vector.shape_cast %315 : vector<1x8x128xf32> to vector<8x128xf32>
    %317 = arith.truncf %290 : vector<8x32xf32> to vector<8x32xbf16>
    %cst_75 = arith.constant dense<0.000000e+00> : vector<8x128xf32>
    %318 = tpu.matmul %317, %0, %cst_75 {dimension_numbers = #tpu.dot_dimension_numbers<[1], [0], [0], [1], [0, 0, 1, 1], [], []>} : vector<8x32xbf16>, vector<32x128xbf16>, vector<8x128xf32> -> vector<8x128xf32>
    %319 = arith.addf %316, %318 : vector<8x128xf32>
    %cst_76 = arith.constant 5.000000e-01 : f32
    %320 = vector.broadcast %cst_76 : f32 to vector<8x128xf32>
    %321 = arith.mulf %320, %319 : vector<8x128xf32>
    %322 = arith.select %20, %319, %321 : vector<8x128xi1>, vector<8x128xf32>
    %323 = math.tanh %322 : vector<8x128xf32>
    %cst_77 = arith.constant 5.000000e-01 : f32
    %324 = vector.broadcast %cst_77 : f32 to vector<8x128xf32>
    %325 = arith.mulf %324, %323 : vector<8x128xf32>
    %cst_78 = arith.constant 5.000000e-01 : f32
    %326 = vector.broadcast %cst_78 : f32 to vector<8x128xf32>
    %327 = arith.addf %325, %326 : vector<8x128xf32>
    %328 = arith.select %20, %323, %327 : vector<8x128xi1>, vector<8x128xf32>
    %329 = vector.extract_strided_slice %328 {offsets = [0, 0], sizes = [8, 32], strides = [1, 1]} : vector<8x128xf32> to vector<8x32xf32>
    %330 = vector.extract_strided_slice %328 {offsets = [0, 32], sizes = [8, 32], strides = [1, 1]} : vector<8x128xf32> to vector<8x32xf32>
    %331 = vector.extract_strided_slice %328 {offsets = [0, 64], sizes = [8, 32], strides = [1, 1]} : vector<8x128xf32> to vector<8x32xf32>
    %332 = vector.extract_strided_slice %328 {offsets = [0, 96], sizes = [8, 32], strides = [1, 1]} : vector<8x128xf32> to vector<8x32xf32>
    %333 = arith.mulf %330, %288 : vector<8x32xf32>
    %334 = arith.mulf %329, %331 : vector<8x32xf32>
    %335 = arith.addf %333, %334 : vector<8x32xf32>
    %336 = math.tanh %335 : vector<8x32xf32>
    %337 = arith.mulf %332, %336 : vector<8x32xf32>
    %338 = arith.truncf %337 : vector<8x32xf32> to vector<8x32xbf16>
    %cst_79 = arith.constant dense<0.000000e+00> : vector<8x128xf32>
    %339 = tpu.matmul %338, %1, %cst_79 {dimension_numbers = #tpu.dot_dimension_numbers<[1], [0], [0], [1], [0, 0, 1, 1], [], []>} : vector<8x32xbf16>, vector<32x128xbf16>, vector<8x128xf32> -> vector<8x128xf32>
    %340 = arith.addf %339, %314 : vector<8x128xf32>
    %341 = arith.addf %340, %14 : vector<8x128xf32>
    %cst_80 = arith.constant 5.000000e-01 : f32
    %342 = vector.broadcast %cst_80 : f32 to vector<8x128xf32>
    %343 = arith.mulf %342, %341 : vector<8x128xf32>
    %344 = arith.select %26, %341, %343 : vector<8x128xi1>, vector<8x128xf32>
    %345 = math.tanh %344 : vector<8x128xf32>
    %cst_81 = arith.constant 5.000000e-01 : f32
    %346 = vector.broadcast %cst_81 : f32 to vector<8x128xf32>
    %347 = arith.mulf %346, %345 : vector<8x128xf32>
    %cst_82 = arith.constant 5.000000e-01 : f32
    %348 = vector.broadcast %cst_82 : f32 to vector<8x128xf32>
    %349 = arith.addf %347, %348 : vector<8x128xf32>
    %350 = arith.select %26, %345, %349 : vector<8x128xi1>, vector<8x128xf32>
    %351 = vector.extract_strided_slice %350 {offsets = [0, 0], sizes = [8, 32], strides = [1, 1]} : vector<8x128xf32> to vector<8x32xf32>
    %352 = vector.extract_strided_slice %350 {offsets = [0, 32], sizes = [8, 32], strides = [1, 1]} : vector<8x128xf32> to vector<8x32xf32>
    %353 = vector.extract_strided_slice %350 {offsets = [0, 64], sizes = [8, 32], strides = [1, 1]} : vector<8x128xf32> to vector<8x32xf32>
    %354 = vector.extract_strided_slice %350 {offsets = [0, 96], sizes = [8, 32], strides = [1, 1]} : vector<8x128xf32> to vector<8x32xf32>
    %355 = arith.mulf %352, %310 : vector<8x32xf32>
    %356 = arith.mulf %351, %353 : vector<8x32xf32>
    %357 = arith.addf %355, %356 : vector<8x32xf32>
    %358 = math.tanh %357 : vector<8x32xf32>
    %359 = arith.mulf %354, %358 : vector<8x32xf32>
    %360 = arith.truncf %359 : vector<8x32xf32> to vector<8x32xbf16>
    %cst_83 = arith.constant dense<0.000000e+00> : vector<8x128xf32>
    %361 = tpu.matmul %360, %2, %cst_83 {dimension_numbers = #tpu.dot_dimension_numbers<[1], [0], [0], [1], [0, 0, 1, 1], [], []>} : vector<8x32xbf16>, vector<32x128xbf16>, vector<8x128xf32> -> vector<8x128xf32>
    %362 = vector.extract_strided_slice %11 {offsets = [7, 0, 0], sizes = [1, 8, 128], strides = [1, 1, 1]} : vector<8x8x128xf32> to vector<1x8x128xf32>
    %363 = vector.shape_cast %362 : vector<1x8x128xf32> to vector<8x128xf32>
    %364 = arith.truncf %337 : vector<8x32xf32> to vector<8x32xbf16>
    %cst_84 = arith.constant dense<0.000000e+00> : vector<8x128xf32>
    %365 = tpu.matmul %364, %0, %cst_84 {dimension_numbers = #tpu.dot_dimension_numbers<[1], [0], [0], [1], [0, 0, 1, 1], [], []>} : vector<8x32xbf16>, vector<32x128xbf16>, vector<8x128xf32> -> vector<8x128xf32>
    %366 = arith.addf %363, %365 : vector<8x128xf32>
    %cst_85 = arith.constant 5.000000e-01 : f32
    %367 = vector.broadcast %cst_85 : f32 to vector<8x128xf32>
    %368 = arith.mulf %367, %366 : vector<8x128xf32>
    %369 = arith.select %20, %366, %368 : vector<8x128xi1>, vector<8x128xf32>
    %370 = math.tanh %369 : vector<8x128xf32>
    %cst_86 = arith.constant 5.000000e-01 : f32
    %371 = vector.broadcast %cst_86 : f32 to vector<8x128xf32>
    %372 = arith.mulf %371, %370 : vector<8x128xf32>
    %cst_87 = arith.constant 5.000000e-01 : f32
    %373 = vector.broadcast %cst_87 : f32 to vector<8x128xf32>
    %374 = arith.addf %372, %373 : vector<8x128xf32>
    %375 = arith.select %20, %370, %374 : vector<8x128xi1>, vector<8x128xf32>
    %376 = vector.extract_strided_slice %375 {offsets = [0, 0], sizes = [8, 32], strides = [1, 1]} : vector<8x128xf32> to vector<8x32xf32>
    %377 = vector.extract_strided_slice %375 {offsets = [0, 32], sizes = [8, 32], strides = [1, 1]} : vector<8x128xf32> to vector<8x32xf32>
    %378 = vector.extract_strided_slice %375 {offsets = [0, 64], sizes = [8, 32], strides = [1, 1]} : vector<8x128xf32> to vector<8x32xf32>
    %379 = vector.extract_strided_slice %375 {offsets = [0, 96], sizes = [8, 32], strides = [1, 1]} : vector<8x128xf32> to vector<8x32xf32>
    %380 = arith.mulf %377, %335 : vector<8x32xf32>
    %381 = arith.mulf %376, %378 : vector<8x32xf32>
    %382 = arith.addf %380, %381 : vector<8x32xf32>
    %383 = math.tanh %382 : vector<8x32xf32>
    %384 = arith.mulf %379, %383 : vector<8x32xf32>
    %385 = arith.truncf %384 : vector<8x32xf32> to vector<8x32xbf16>
    %cst_88 = arith.constant dense<0.000000e+00> : vector<8x128xf32>
    %386 = tpu.matmul %385, %1, %cst_88 {dimension_numbers = #tpu.dot_dimension_numbers<[1], [0], [0], [1], [0, 0, 1, 1], [], []>} : vector<8x32xbf16>, vector<32x128xbf16>, vector<8x128xf32> -> vector<8x128xf32>
    %387 = arith.addf %386, %361 : vector<8x128xf32>
    %388 = arith.addf %387, %14 : vector<8x128xf32>
    %cst_89 = arith.constant 5.000000e-01 : f32
    %389 = vector.broadcast %cst_89 : f32 to vector<8x128xf32>
    %390 = arith.mulf %389, %388 : vector<8x128xf32>
    %391 = arith.select %26, %388, %390 : vector<8x128xi1>, vector<8x128xf32>
    %392 = math.tanh %391 : vector<8x128xf32>
    %cst_90 = arith.constant 5.000000e-01 : f32
    %393 = vector.broadcast %cst_90 : f32 to vector<8x128xf32>
    %394 = arith.mulf %393, %392 : vector<8x128xf32>
    %cst_91 = arith.constant 5.000000e-01 : f32
    %395 = vector.broadcast %cst_91 : f32 to vector<8x128xf32>
    %396 = arith.addf %394, %395 : vector<8x128xf32>
    %397 = arith.select %26, %392, %396 : vector<8x128xi1>, vector<8x128xf32>
    %398 = vector.extract_strided_slice %397 {offsets = [0, 0], sizes = [8, 32], strides = [1, 1]} : vector<8x128xf32> to vector<8x32xf32>
    %399 = vector.extract_strided_slice %397 {offsets = [0, 32], sizes = [8, 32], strides = [1, 1]} : vector<8x128xf32> to vector<8x32xf32>
    %400 = vector.extract_strided_slice %397 {offsets = [0, 64], sizes = [8, 32], strides = [1, 1]} : vector<8x128xf32> to vector<8x32xf32>
    %401 = vector.extract_strided_slice %397 {offsets = [0, 96], sizes = [8, 32], strides = [1, 1]} : vector<8x128xf32> to vector<8x32xf32>
    %402 = arith.mulf %399, %357 : vector<8x32xf32>
    %403 = arith.mulf %398, %400 : vector<8x32xf32>
    %404 = arith.addf %402, %403 : vector<8x32xf32>
    %405 = math.tanh %404 : vector<8x32xf32>
    %406 = arith.mulf %401, %405 : vector<8x32xf32>
    %407 = arith.truncf %406 : vector<8x32xf32> to vector<8x32xbf16>
    %c0_92 = arith.constant 0 : index
    %c0_93 = arith.constant 0 : index
    %408 = vector.load %arg8[%c0_92, %c0_93] : memref<32x8xbf16, #tpu.memory_space<vmem>>, vector<32x8xbf16>
    %cst_94 = arith.constant dense<0.000000e+00> : vector<8x8xf32>
    %409 = tpu.matmul %407, %408, %cst_94 {dimension_numbers = #tpu.dot_dimension_numbers<[1], [0], [0], [1], [0, 0, 1, 1], [], []>} : vector<8x32xbf16>, vector<32x8xbf16>, vector<8x8xf32> -> vector<8x8xf32>
    %c0_95 = arith.constant 0 : index
    %c0_96 = arith.constant 0 : index
    %410 = vector.load %arg9[%c0_95, %c0_96] : memref<1x8xf32, #tpu.memory_space<vmem>>, vector<1x8xf32>
    %411 = vector.broadcast %410 : vector<1x8xf32> to vector<8x8xf32>
    %412 = arith.addf %409, %411 : vector<8x8xf32>
    %cst_97 = arith.constant dense<0xFF800000> : vector<8xf32>
    %413 = vector.multi_reduction <maximumf>, %412, %cst_97 [1] : vector<8x8xf32> to vector<8xf32>
    %414 = vector.shape_cast %413 : vector<8xf32> to vector<8x1xf32>
    %415 = vector.broadcast %414 : vector<8x1xf32> to vector<8x8xf32>
    %416 = arith.subf %412, %415 : vector<8x8xf32>
    %417 = math.exp %416 : vector<8x8xf32>
    %cst_98 = arith.constant dense<0.000000e+00> : vector<8xf32>
    %418 = vector.multi_reduction <add>, %417, %cst_98 [1] : vector<8x8xf32> to vector<8xf32>
    %419 = vector.shape_cast %418 : vector<8xf32> to vector<8x1xf32>
    %420 = vector.broadcast %419 : vector<8x1xf32> to vector<8x8xf32>
    %421 = arith.divf %417, %420 : vector<8x8xf32>
    %c0_99 = arith.constant 0 : index
    %c0_100 = arith.constant 0 : index
    %422 = vector.load %arg10[%c0_99, %c0_100] : memref<8x8xf32, #tpu.memory_space<vmem>>, vector<8x8xf32>
    tpu.vector_store %arg10[%c0_99, %c0_100], %421 {strides = array<i32>} : memref<8x8xf32, #tpu.memory_space<vmem>>, vector<8x8xf32>,
    return
  }
  func.func @transform_0(%arg0: i32) -> (i32, i32, i32) {
    %c0_i32 = arith.constant 0 : i32
    %c0_i32_0 = arith.constant 0 : i32
    %c0_i32_1 = arith.constant 0 : i32
    return %c0_i32, %arg0, %c0_i32_0 : i32, i32, i32
  }
  func.func @transform_1(%arg0: i32) -> (i32, i32) {
    %c0_i32 = arith.constant 0 : i32
    %c0_i32_0 = arith.constant 0 : i32
    %c0_i32_1 = arith.constant 0 : i32
    return %c0_i32, %c0_i32_0 : i32, i32
  }
  func.func @transform_2(%arg0: i32) -> (i32, i32) {
    %c0_i32 = arith.constant 0 : i32
    %c0_i32_0 = arith.constant 0 : i32
    %c0_i32_1 = arith.constant 0 : i32
    return %c0_i32, %c0_i32_0 : i32, i32
  }
  func.func @transform_3(%arg0: i32) -> (i32, i32) {
    %c0_i32 = arith.constant 0 : i32
    %c0_i32_0 = arith.constant 0 : i32
    %c0_i32_1 = arith.constant 0 : i32
    return %c0_i32, %c0_i32_0 : i32, i32
  }
  func.func @transform_4(%arg0: i32) -> (i32, i32) {
    %c0_i32 = arith.constant 0 : i32
    %c0_i32_0 = arith.constant 0 : i32
    %c0_i32_1 = arith.constant 0 : i32
    return %c0_i32, %c0_i32_0 : i32, i32
  }
  func.func @transform_5(%arg0: i32) -> (i32, i32) {
    %c0_i32 = arith.constant 0 : i32
    %c0_i32_0 = arith.constant 0 : i32
    %c0_i32_1 = arith.constant 0 : i32
    return %c0_i32, %c0_i32_0 : i32, i32
  }
  func.func @transform_6(%arg0: i32) -> (i32, i32) {
    %c0_i32 = arith.constant 0 : i32
    %c0_i32_0 = arith.constant 0 : i32
    %c0_i32_1 = arith.constant 0 : i32
    return %c0_i32, %c0_i32_0 : i32, i32
  }
  func.func @transform_7(%arg0: i32) -> (i32, i32) {
    %c0_i32 = arith.constant 0 : i32
    %c0_i32_0 = arith.constant 0 : i32
    %c0_i32_1 = arith.constant 0 : i32
    return %c0_i32, %c0_i32_0 : i32, i32
  }
  func.func @transform_8(%arg0: i32) -> (i32, i32) {
    %c0_i32 = arith.constant 0 : i32
    %c0_i32_0 = arith.constant 0 : i32
    %c0_i32_1 = arith.constant 0 : i32
    return %c0_i32, %c0_i32_0 : i32, i32
  }
  func.func @transform_9(%arg0: i32) -> (i32, i32) {
    %c0_i32 = arith.constant 0 : i32
    %c0_i32_0 = arith.constant 0 : i32
    return %arg0, %c0_i32 : i32, i32
  }
}

</mosaic_0001>

<llo_original>
// kernel: tpu_custom_call.1
$region0: #{tpu_custom_call.1}
  #allocation0 [shape = 'u32[]', space=smem, size = 0x4, offset = 0x4, fixed_abs, tag = 'smem constant byte address 0x4 - core index']
  #allocation1 [shape = 'u32[144,128]{1,0:T(1,128)}', space=vmem, size = 0x12000, scoped, tag = 'internal scratch']
  %s0 = inlined_call_operand.hbm [shape: f32[8,8,16], index: 0, kind: input, shape index: {}]
  %s1 = inlined_call_operand.hbm [shape: bf16[16,128], index: 1, kind: input, shape index: {}]
  %s2 = inlined_call_operand.vmem [shape: bf16[32,128], index: 2, kind: input, shape index: {}]
  %s3 = inlined_call_operand.vmem [shape: f32[1,128], index: 3, kind: input, shape index: {}]
  %s4 = inlined_call_operand.vmem [shape: bf16[32,128], index: 4, kind: input, shape index: {}]
  %s5 = inlined_call_operand.hbm [shape: bf16[32,128], index: 5, kind: input, shape index: {}]
  %s6 = inlined_call_operand.vmem [shape: f32[1,128], index: 6, kind: input, shape index: {}]
  %s7 = inlined_call_operand.vmem [shape: bf16[32,8], index: 7, kind: input, shape index: {}]
  %s8 = inlined_call_operand.vmem [shape: f32[1,8], index: 8, kind: input, shape index: {}]
  %s9 = inlined_call_operand.hbm [shape: f32[8,8], index: 9, kind: output, shape index: {}]
  %s10 = sld [smem:[#allocation0]]
  $region58: #{tpu_custom_call.1} parent=0
    _
  %s12 = ssub.s32 1, %s10
  %s13 = scalar_select 0, %s12, %s10
  $region1: #{tpu_custom_call.1} parent=0
    #allocation2 [shape = 'u8[32768]{0}', space=vmem, size = 0x8000, scoped, tag = 'input window, operand 0, single buffered']
    #allocation3 [shape = 's32[1]{0}', space=sflag, size = 0x4, scoped, tag = 'scoped memory for tpu_custom_call.1']
    #allocation4 [shape = 's32[1]{0}', space=sflag, size = 0x4, scoped, tag = 'scoped memory for tpu_custom_call.1']
    #allocation5 [shape = 'u8[4096]{0}', space=vmem, size = 0x1000, scoped, tag = 'input window, operand 1, single buffered']
    #allocation6 [shape = 's32[1]{0}', space=sflag, size = 0x4, scoped, tag = 'scoped memory for tpu_custom_call.1']
    #allocation7 [shape = 'u8[8192]{0}', space=vmem, size = 0x2000, scoped, tag = 'input window, operand 5, single buffered']
    #allocation8 [shape = 'u8[4096]{0}', space=vmem, size = 0x1000, scoped, tag = 'output window, operand 0, single buffered']
    %14 = vsyncpa [#allocation3], 0
    %15 = vsyncpa [#allocation6], 0
    %16 = vsyncpa [#allocation4], 0
    // Predicated region
    $region2: #{tpu_custom_call.1} parent=1 // pred_check
      _
    $region3: #{tpu_custom_call.1} parent=1 // pred_check_branch
      %18 = sbr.rel (0) target = $region5
    $region4: #{tpu_custom_call.1} parent=1 // pred_region
      %s20 = ssub.s32 1024, 1024
      %21 = vsyncadd [#allocation3], %s20
      %s22 = sshll.u32 [#allocation2], 4
      %s23 = int_to_ptr.vmem [resolvable:$true] %s22
      %28 = dma.hbm_to_vmem [thread:$0]  %s0, 1024, %s23, [#allocation3], 128, 128, 8
    $region5: #{tpu_custom_call.1} parent=1 // pred_fallthru
      _
    // Predicated region
    $region6: #{tpu_custom_call.1} parent=1 // pred_check
      _
    $region7: #{tpu_custom_call.1} parent=1 // pred_check_branch
      %30 = sbr.rel (0) target = $region9
    $region8: #{tpu_custom_call.1} parent=1 // pred_region
      %s32 = ssub.s32 128, 128
      %33 = vsyncadd [#allocation6], %s32
      %s34 = sshll.u32 [#allocation5], 4
      %s35 = int_to_ptr.vmem [resolvable:$true] %s34
      %40 = dma.hbm_to_vmem [thread:$0]  %s1, 128, %s35, [#allocation6], 64, 64, 4
    $region9: #{tpu_custom_call.1} parent=1 // pred_fallthru
      _
    // Predicated region
    $region10: #{tpu_custom_call.1} parent=1 // pred_check
      _
    $region11: #{tpu_custom_call.1} parent=1 // pred_check_branch
      %42 = sbr.rel (0) target = $region13
    $region12: #{tpu_custom_call.1} parent=1 // pred_region
      _
    $region13: #{tpu_custom_call.1} parent=1 // pred_fallthru
      _
    // Predicated region
    $region14: #{tpu_custom_call.1} parent=1 // pred_check
      _
    $region15: #{tpu_custom_call.1} parent=1 // pred_check_branch
      %44 = sbr.rel (0) target = $region17
    $region16: #{tpu_custom_call.1} parent=1 // pred_region
      _
    $region17: #{tpu_custom_call.1} parent=1 // pred_fallthru
      _
    // Predicated region
    $region18: #{tpu_custom_call.1} parent=1 // pred_check
      _
    $region19: #{tpu_custom_call.1} parent=1 // pred_check_branch
      %46 = sbr.rel (0) target = $region21
    $region20: #{tpu_custom_call.1} parent=1 // pred_region
      _
    $region21: #{tpu_custom_call.1} parent=1 // pred_fallthru
      _
    // Predicated region
    $region22: #{tpu_custom_call.1} parent=1 // pred_check
      _
    $region23: #{tpu_custom_call.1} parent=1 // pred_check_branch
      %48 = sbr.rel (0) target = $region25
    $region24: #{tpu_custom_call.1} parent=1 // pred_region
      %s50 = ssub.s32 256, 256
      %51 = vsyncadd [#allocation6], %s50
      %s52 = sshll.u32 [#allocation7], 4
      %s53 = int_to_ptr.vmem [resolvable:$true] %s52
      %58 = dma.hbm_to_vmem [thread:$0]  %s5, 256, %s53, [#allocation6], 64, 64, 4
    $region25: #{tpu_custom_call.1} parent=1 // pred_fallthru
      _
    // Predicated region
    $region26: #{tpu_custom_call.1} parent=1 // pred_check
      _
    $region27: #{tpu_custom_call.1} parent=1 // pred_check_branch
      %60 = sbr.rel (0) target = $region29
    $region28: #{tpu_custom_call.1} parent=1 // pred_region
      _
    $region29: #{tpu_custom_call.1} parent=1 // pred_fallthru
      _
    // Predicated region
    $region30: #{tpu_custom_call.1} parent=1 // pred_check
      _
    $region31: #{tpu_custom_call.1} parent=1 // pred_check_branch
      %62 = sbr.rel (0) target = $region33
    $region32: #{tpu_custom_call.1} parent=1 // pred_region
      _
    $region33: #{tpu_custom_call.1} parent=1 // pred_fallthru
      _
    // Predicated region
    $region34: #{tpu_custom_call.1} parent=1 // pred_check
      _
    $region35: #{tpu_custom_call.1} parent=1 // pred_check_branch
      %64 = sbr.rel (0) target = $region37
    $region36: #{tpu_custom_call.1} parent=1 // pred_region
      _
    $region37: #{tpu_custom_call.1} parent=1 // pred_fallthru
      _
    // Predicated region
    $region38: #{tpu_custom_call.1} parent=1 // pred_check
      _
    $region39: #{tpu_custom_call.1} parent=1 // pred_check_branch
      %66 = sbr.rel (0) target = $region41
    $region40: #{tpu_custom_call.1} parent=1 // pred_region
      %67 = dma.done [#allocation3], 1024
    $region41: #{tpu_custom_call.1} parent=1 // pred_fallthru
      _
    // Predicated region
    $region42: #{tpu_custom_call.1} parent=1 // pred_check
      _
    $region43: #{tpu_custom_call.1} parent=1 // pred_check_branch
      %69 = sbr.rel (0) target = $region45
    $region44: #{tpu_custom_call.1} parent=1 // pred_region
      %70 = dma.done [#allocation6], 128
    $region45: #{tpu_custom_call.1} parent=1 // pred_fallthru
      _
    // Predicated region
    $region46: #{tpu_custom_call.1} parent=1 // pred_check
      _
    $region47: #{tpu_custom_call.1} parent=1 // pred_check_branch
      %72 = sbr.rel (0) target = $region49
    $region48: #{tpu_custom_call.1} parent=1 // pred_region
      %73 = dma.done [#allocation6], 256
    $region49: #{tpu_custom_call.1} parent=1 // pred_fallthru
      _
    %v75 = vld [vmem:[%s2] sm:$0xf]
    %v76 = vld [vmem:[%s2 + $0x4] sm:$0xf]
    %v77 = vld [vmem:[%s2 + $0x8] sm:$0xf]
    %v78 = vld [vmem:[%s2 + $0xc] sm:$0xf]
    %v79 = vld [vmem:[%s4] sm:$0xf]
    %v80 = vld [vmem:[%s4 + $0x4] sm:$0xf]
    %v81 = vld [vmem:[%s4 + $0x8] sm:$0xf]
    %v82 = vld [vmem:[%s4 + $0xc] sm:$0xf]
    %v83 = vld [vmem:[#allocation7] sm:$0xf]
    %v84 = vld [vmem:[#allocation7 + $0x4] sm:$0xf]
    %v85 = vld [vmem:[#allocation7 + $0x8] sm:$0xf]
    %v86 = vld [vmem:[#allocation7 + $0xc] sm:$0xf]
    %v87 = vld [vmem:[#allocation2] sm:$0xff]
    %v88 = vld [vmem:[#allocation2 + $0x8] sm:$0xff]
    %v89 = vld [vmem:[#allocation2 + $0x10] sm:$0xff]
    %v90 = vld [vmem:[#allocation2 + $0x18] sm:$0xff]
    %v91 = vld [vmem:[#allocation2 + $0x20] sm:$0xff]
    %v92 = vld [vmem:[#allocation2 + $0x28] sm:$0xff]
    %v93 = vld [vmem:[#allocation2 + $0x30] sm:$0xff]
    %v94 = vld [vmem:[#allocation2 + $0x38] sm:$0xff]
    %v95 = vpack.c.bf16 %v88, %v87
    %v96 = vpack.c.bf16 %v90, %v89
    %v97 = vpack.c.bf16 %v92, %v91
    %v98 = vpack.c.bf16 %v94, %v93
    %v99 = vld [vmem:[#allocation5] sm:$0xf]
    %v100 = vld [vmem:[#allocation5 + $0x4] sm:$0xf]
    %v101 = vld [vmem:[%s3] sm:$0x1]
    %v103 = vlaneseq
    %v104 = vshrl.u32 %v103, 7
    %v105 = vsub.s32 0, %v104
    %v106 = vrot.slane %v101, %v105
    %v110 = vunpack.c.l.b16 %v99
    %v111 = vunpack.c.l.b16 %v100
    %v112 = vpack.c.b16 %v111, %v110
    %vm114 = vcmask 130048
    %v116 = vsel %vm114, %v95, 0
    %v119 = vsel %vm114, %v96, 0
    %v122 = vsel %vm114, %v97, 0
    %v125 = vsel %vm114, %v98, 0
    %127 = vmatprep.subr.bf16.mxu0 0
    %128 = vmatpush1.bf16.msra.mxu0 %v112
    %129 = vmatprep.subr.bf16.mxu0 0
    %130 = vmatpush1.bf16.msra.mxu0 0
    %131 = vmatprep.subr.bf16.mxu0 0
    %132 = vmatpush1.bf16.msra.mxu0 0
    %133 = vmatprep.subr.bf16.mxu0 0
    %134 = vmatpush1.bf16.msra.mxu0 0
    %135 = vmatprep.subr.bf16.mxu0 0
    %136 = vmatpush1.bf16.msra.mxu0 0
    %137 = vmatprep.subr.bf16.mxu0 0
    %138 = vmatpush1.bf16.msra.mxu0 0
    %139 = vmatprep.subr.bf16.mxu0 0
    %140 = vmatpush1.bf16.msra.mxu0 0
    %141 = vmatprep.subr.bf16.mxu0 0
    %142 = vmatpush1.bf16.msra.mxu0 0
    %143 = vmatprep.subr.bf16.mxu0 0
    %144 = vmatpush1.bf16.msra.mxu0 0
    %145 = vmatprep.subr.bf16.mxu0 0
    %146 = vmatpush1.bf16.msra.mxu0 0
    %147 = vmatprep.subr.bf16.mxu0 0
    %148 = vmatpush1.bf16.msra.mxu0 0
    %149 = vmatprep.subr.bf16.mxu0 0
    %150 = vmatpush1.bf16.msra.mxu0 0
    %151 = vmatprep.subr.bf16.mxu0 0
    %152 = vmatpush1.bf16.msra.mxu0 0
    %153 = vmatprep.subr.bf16.mxu0 0
    %154 = vmatpush1.bf16.msra.mxu0 0
    %155 = vmatprep.subr.bf16.mxu0 0
    %156 = vmatpush1.bf16.msra.mxu0 0
    %157 = vmatprep.subr.bf16.mxu0 0
    %158 = vmatpush1.bf16.msra.mxu0 0
    %159 = vmatprep.mubr.bf16.mxu0 0
    %160 = vmatmul.mubr.bf16.gmra.mrb[0].mxu0 %v116
    %v161 = vpop.f32.mrb[0].mxu0
    %v162 = vadd.f32 %v106, %v161
    %v163 = vpop.f32.mrb[0].mxu0
    %v164 = vpop.f32.mrb[0].mxu0
    %v165 = vadd.f32 %v106, %v164
    %v166 = vpop.f32.mrb[0].mxu0
    %167 = vmatprep.mubr.bf16.mxu0 0
    %168 = vmatmul.mubr.bf16.gmra.mrb[0].mxu0 %v119
    %v169 = vpop.f32.mrb[0].mxu0
    %v170 = vadd.f32 %v106, %v169
    %v171 = vpop.f32.mrb[0].mxu0
    %v172 = vpop.f32.mrb[0].mxu0
    %v173 = vadd.f32 %v106, %v172
    %v174 = vpop.f32.mrb[0].mxu0
    %175 = vmatprep.mubr.bf16.mxu0 0
    %176 = vmatmul.mubr.bf16.gmra.mrb[0].mxu0 %v122
    %v177 = vpop.f32.mrb[0].mxu0
    %v178 = vadd.f32 %v106, %v177
    %v179 = vpop.f32.mrb[0].mxu0
    %v180 = vpop.f32.mrb[0].mxu0
    %v181 = vadd.f32 %v106, %v180
    %v182 = vpop.f32.mrb[0].mxu0
    %183 = vmatprep.mubr.bf16.mxu0 0
    %184 = vmatmul.mubr.bf16.gmra.mrb[0].mxu0 %v125
    %v185 = vpop.f32.mrb[0].mxu0
    %v186 = vadd.f32 %v106, %v185
    %v187 = vpop.f32.mrb[0].mxu0
    %v188 = vpop.f32.mrb[0].mxu0
    %v189 = vadd.f32 %v106, %v188
    %v190 = vpop.f32.mrb[0].mxu0
    %191 = vdwg.mxu0
    %v192 = vld [vmem:[%s6] sm:$0x1]
    %v194 = vlaneseq
    %v195 = vshrl.u32 %v194, 7
    %v196 = vsub.s32 0, %v195
    %v197 = vrot.slane %v192, %v196
    %v199 = vlaneseq
    %v200 = vand.u32 %v199, 127
    %vm201 = vcmp.ge.s32.totalorder %v200, 64
    %vm202 = vcmp.lt.s32.totalorder %v200, 96
    %vm203 = vmand %vm201, %vm202
    %v208 = vunpack.c.l.b16 %v83
    %v209 = vunpack.c.l.b16 %v84
    %v210 = vunpack.c.l.b16 %v85
    %v211 = vunpack.c.l.b16 %v86
    %v212 = vpack.c.b16 %v209, %v208
    %v213 = vpack.c.b16 %v211, %v210
    %vm216 = vcmask 261120
    %v218 = vsel %vm216, 0, 0
    %220 = vmatprep.subr.bf16.mxu0 0
    %221 = vmatpush1.bf16.msra.mxu0 %v212
    %222 = vmatprep.subr.bf16.mxu0 0
    %223 = vmatpush1.bf16.msra.mxu0 %v213
    %224 = vmatprep.subr.bf16.mxu0 0
    %225 = vmatpush1.bf16.msra.mxu0 0
    %226 = vmatprep.subr.bf16.mxu0 0
    %227 = vmatpush1.bf16.msra.mxu0 0
    %228 = vmatprep.subr.bf16.mxu0 0
    %229 = vmatpush1.bf16.msra.mxu0 0
    %230 = vmatprep.subr.bf16.mxu0 0
    %231 = vmatpush1.bf16.msra.mxu0 0
    %232 = vmatprep.subr.bf16.mxu0 0
    %233 = vmatpush1.bf16.msra.mxu0 0
    %234 = vmatprep.subr.bf16.mxu0 0
    %235 = vmatpush1.bf16.msra.mxu0 0
    %236 = vmatprep.subr.bf16.mxu0 0
    %237 = vmatpush1.bf16.msra.mxu0 0
    %238 = vmatprep.subr.bf16.mxu0 0
    %239 = vmatpush1.bf16.msra.mxu0 0
    %240 = vmatprep.subr.bf16.mxu0 0
    %241 = vmatpush1.bf16.msra.mxu0 0
    %242 = vmatprep.subr.bf16.mxu0 0
    %243 = vmatpush1.bf16.msra.mxu0 0
    %244 = vmatprep.subr.bf16.mxu0 0
    %245 = vmatpush1.bf16.msra.mxu0 0
    %246 = vmatprep.subr.bf16.mxu0 0
    %247 = vmatpush1.bf16.msra.mxu0 0
    %248 = vmatprep.subr.bf16.mxu0 0
    %249 = vmatpush1.bf16.msra.mxu0 0
    %250 = vmatprep.subr.bf16.mxu0 0
    %251 = vmatpush1.bf16.msra.mxu0 0
    %252 = vmatprep.mubr.bf16.mxu0 0
    %253 = vmatmul.mubr.bf16.gmra.mrb[0].mxu0 %v218
    %v254 = vpop.f32.mrb[0].mxu0
    %v255 = vadd.f32 0.0, %v254
    %v256 = vpop.f32.mrb[0].mxu0
    %v257 = vpop.f32.mrb[0].mxu0
    %v258 = vpop.f32.mrb[0].mxu0
    %259 = vdwg.mxu0
    %v264 = vunpack.c.l.b16 %v75
    %v265 = vunpack.c.l.b16 %v76
    %v266 = vunpack.c.l.b16 %v77
    %v267 = vunpack.c.l.b16 %v78
    %v268 = vpack.c.b16 %v265, %v264
    %v269 = vpack.c.b16 %v267, %v266
    %272 = vmatprep.subr.bf16.mxu0 0
    %273 = vmatpush1.bf16.msra.mxu0 %v268
    %274 = vmatprep.subr.bf16.mxu0 0
    %275 = vmatpush1.bf16.msra.mxu0 %v269
    %276 = vmatprep.subr.bf16.mxu0 0
    %277 = vmatpush1.bf16.msra.mxu0 0
    %278 = vmatprep.subr.bf16.mxu0 0
    %279 = vmatpush1.bf16.msra.mxu0 0
    %280 = vmatprep.subr.bf16.mxu0 0
    %281 = vmatpush1.bf16.msra.mxu0 0
    %282 = vmatprep.subr.bf16.mxu0 0
    %283 = vmatpush1.bf16.msra.mxu0 0
    %284 = vmatprep.subr.bf16.mxu0 0
    %285 = vmatpush1.bf16.msra.mxu0 0
    %286 = vmatprep.subr.bf16.mxu0 0
    %287 = vmatpush1.bf16.msra.mxu0 0
    %288 = vmatprep.subr.bf16.mxu0 0
    %289 = vmatpush1.bf16.msra.mxu0 0
    %290 = vmatprep.subr.bf16.mxu0 0
    %291 = vmatpush1.bf16.msra.mxu0 0
    %292 = vmatprep.subr.bf16.mxu0 0
    %293 = vmatpush1.bf16.msra.mxu0 0
    %294 = vmatprep.subr.bf16.mxu0 0
    %295 = vmatpush1.bf16.msra.mxu0 0
    %296 = vmatprep.subr.bf16.mxu0 0
    %297 = vmatpush1.bf16.msra.mxu0 0
    %298 = vmatprep.subr.bf16.mxu0 0
    %299 = vmatpush1.bf16.msra.mxu0 0
    %300 = vmatprep.subr.bf16.mxu0 0
    %301 = vmatpush1.bf16.msra.mxu0 0
    %302 = vmatprep.subr.bf16.mxu0 0
    %303 = vmatpush1.bf16.msra.mxu0 0
    %304 = vmatprep.mubr.bf16.mxu0 0
    %305 = vmatmul.mubr.bf16.gmra.mrb[0].mxu0 %v218
    %v306 = vpop.f32.mrb[0].mxu0
    %v307 = vadd.f32 0.0, %v306
    %v308 = vpop.f32.mrb[0].mxu0
    %v309 = vpop.f32.mrb[0].mxu0
    %v310 = vpop.f32.mrb[0].mxu0
    %311 = vdwg.mxu0
    %v312 = vadd.f32 %v162, %v307
    %v313 = vmul.f32 %v312, 0.5
    %v314 = vsel %vm203, %v312, %v313
    %v315 = vtanh.pop %v314
    %v316 = vmul.f32 %v315, 0.5
    %v317 = vadd.f32 %v316, 0.5
    %v318 = vsel %vm203, %v315, %v317
    %v319 = vmul.f32 %v318, 0.0
    %321 = vrot.lane.b32.xlu0 %v318, 64
    %v322 = vpop.permute.xlu0 %321
    %v324 = vmul.f32 %v318, %v322
    %326 = vrot.lane.b32.xlu0 %v324, 32
    %v327 = vpop.permute.xlu0 %326
    %v329 = vadd.f32 %v319, %v327
    %v330 = vtanh.pop %v329
    %332 = vrot.lane.b32.xlu0 %v330, 64
    %v333 = vpop.permute.xlu0 %332
    %v335 = vmul.f32 %v318, %v333
    %v336 = vpack.c.bf16 %v335, %v335
    %338 = vrot.lane.b32.xlu0 %v336, 32
    %v339 = vpop.permute.xlu0 %338
    %v344 = vunpack.c.l.b16 %v79
    %v345 = vunpack.c.l.b16 %v80
    %v346 = vunpack.c.l.b16 %v81
    %v347 = vunpack.c.l.b16 %v82
    %v348 = vpack.c.b16 %v345, %v344
    %v349 = vpack.c.b16 %v347, %v346
    %v353 = vsel %vm216, %v339, 0
    %355 = vmatprep.subr.bf16.mxu0 0
    %356 = vmatpush1.bf16.msra.mxu0 %v348
    %357 = vmatprep.subr.bf16.mxu0 0
    %358 = vmatpush1.bf16.msra.mxu0 %v349
    %359 = vmatprep.subr.bf16.mxu0 0
    %360 = vmatpush1.bf16.msra.mxu0 0
    %361 = vmatprep.subr.bf16.mxu0 0
    %362 = vmatpush1.bf16.msra.mxu0 0
    %363 = vmatprep.subr.bf16.mxu0 0
    %364 = vmatpush1.bf16.msra.mxu0 0
    %365 = vmatprep.subr.bf16.mxu0 0
    %366 = vmatpush1.bf16.msra.mxu0 0
    %367 = vmatprep.subr.bf16.mxu0 0
    %368 = vmatpush1.bf16.msra.mxu0 0
    %369 = vmatprep.subr.bf16.mxu0 0
    %370 = vmatpush1.bf16.msra.mxu0 0
    %371 = vmatprep.subr.bf16.mxu0 0
    %372 = vmatpush1.bf16.msra.mxu0 0
    %373 = vmatprep.subr.bf16.mxu0 0
    %374 = vmatpush1.bf16.msra.mxu0 0
    %375 = vmatprep.subr.bf16.mxu0 0
    %376 = vmatpush1.bf16.msra.mxu0 0
    %377 = vmatprep.subr.bf16.mxu0 0
    %378 = vmatpush1.bf16.msra.mxu0 0
    %379 = vmatprep.subr.bf16.mxu0 0
    %380 = vmatpush1.bf16.msra.mxu0 0
    %381 = vmatprep.subr.bf16.mxu0 0
    %382 = vmatpush1.bf16.msra.mxu0 0
    %383 = vmatprep.subr.bf16.mxu0 0
    %384 = vmatpush1.bf16.msra.mxu0 0
    %385 = vmatprep.subr.bf16.mxu0 0
    %386 = vmatpush1.bf16.msra.mxu0 0
    %387 = vmatprep.mubr.bf16.mxu0 0
    %388 = vmatmul.mubr.bf16.gmra.mrb[0].mxu0 %v353
    %v389 = vpop.f32.mrb[0].mxu0
    %v390 = vadd.f32 %v255, %v389
    %v391 = vpop.f32.mrb[0].mxu0
    %v392 = vpop.f32.mrb[0].mxu0
    %v393 = vpop.f32.mrb[0].mxu0
    %394 = vdwg.mxu0
    %v395 = vadd.f32 %v390, %v197
    %v396 = vmul.f32 %v395, 0.5
    %v397 = vsel %vm203, %v395, %v396
    %v398 = vtanh.pop %v397
    %v399 = vmul.f32 %v398, 0.5
    %v400 = vadd.f32 %v399, 0.5
    %v401 = vsel %vm203, %v398, %v400
    %v402 = vmul.f32 %v401, 0.0
    %404 = vrot.lane.b32.xlu0 %v401, 64
    %v405 = vpop.permute.xlu0 %404
    %v407 = vmul.f32 %v401, %v405
    %409 = vrot.lane.b32.xlu0 %v407, 32
    %v410 = vpop.permute.xlu0 %409
    %v412 = vadd.f32 %v402, %v410
    %v413 = vtanh.pop %v412
    %415 = vrot.lane.b32.xlu0 %v413, 64
    %v416 = vpop.permute.xlu0 %415
    %v418 = vmul.f32 %v401, %v416
    %v419 = vpack.c.bf16 %v418, %v418
    %421 = vrot.lane.b32.xlu0 %v419, 32
    %v422 = vpop.permute.xlu0 %421
    %v424 = vsel %vm216, %v422, 0
    %426 = vmatprep.subr.bf16.mxu0 0
    %427 = vmatpush1.bf16.msra.mxu0 %v212
    %428 = vmatprep.subr.bf16.mxu0 0
    %429 = vmatpush1.bf16.msra.mxu0 %v213
    %430 = vmatprep.subr.bf16.mxu0 0
    %431 = vmatpush1.bf16.msra.mxu0 0
    %432 = vmatprep.subr.bf16.mxu0 0
    %433 = vmatpush1.bf16.msra.mxu0 0
    %434 = vmatprep.subr.bf16.mxu0 0
    %435 = vmatpush1.bf16.msra.mxu0 0
    %436 = vmatprep.subr.bf16.mxu0 0
    %437 = vmatpush1.bf16.msra.mxu0 0
    %438 = vmatprep.subr.bf16.mxu0 0
    %439 = vmatpush1.bf16.msra.mxu0 0
    %440 = vmatprep.subr.bf16.mxu0 0
    %441 = vmatpush1.bf16.msra.mxu0 0
    %442 = vmatprep.subr.bf16.mxu0 0
    %443 = vmatpush1.bf16.msra.mxu0 0
    %444 = vmatprep.subr.bf16.mxu0 0
    %445 = vmatpush1.bf16.msra.mxu0 0
    %446 = vmatprep.subr.bf16.mxu0 0
    %447 = vmatpush1.bf16.msra.mxu0 0
    %448 = vmatprep.subr.bf16.mxu0 0
    %449 = vmatpush1.bf16.msra.mxu0 0
    %450 = vmatprep.subr.bf16.mxu0 0
    %451 = vmatpush1.bf16.msra.mxu0 0
    %452 = vmatprep.subr.bf16.mxu0 0
    %453 = vmatpush1.bf16.msra.mxu0 0
    %454 = vmatprep.subr.bf16.mxu0 0
    %455 = vmatpush1.bf16.msra.mxu0 0
    %456 = vmatprep.subr.bf16.mxu0 0
    %457 = vmatpush1.bf16.msra.mxu0 0
    %458 = vmatprep.mubr.bf16.mxu0 0
    %459 = vmatmul.mubr.bf16.gmra.mrb[0].mxu0 %v424
    %v460 = vpop.f32.mrb[0].mxu0
    %v461 = vadd.f32 0.0, %v460
    %v462 = vpop.f32.mrb[0].mxu0
    %v463 = vpop.f32.mrb[0].mxu0
    %v464 = vpop.f32.mrb[0].mxu0
    %465 = vdwg.mxu0
    %466 = vmatprep.subr.bf16.mxu0 0
    %467 = vmatpush1.bf16.msra.mxu0 %v268
    %468 = vmatprep.subr.bf16.mxu0 0
    %469 = vmatpush1.bf16.msra.mxu0 %v269
    %470 = vmatprep.subr.bf16.mxu0 0
    %471 = vmatpush1.bf16.msra.mxu0 0
    %472 = vmatprep.subr.bf16.mxu0 0
    %473 = vmatpush1.bf16.msra.mxu0 0
    %474 = vmatprep.subr.bf16.mxu0 0
    %475 = vmatpush1.bf16.msra.mxu0 0
    %476 = vmatprep.subr.bf16.mxu0 0
    %477 = vmatpush1.bf16.msra.mxu0 0
    %478 = vmatprep.subr.bf16.mxu0 0
    %479 = vmatpush1.bf16.msra.mxu0 0
    %480 = vmatprep.subr.bf16.mxu0 0
    %481 = vmatpush1.bf16.msra.mxu0 0
    %482 = vmatprep.subr.bf16.mxu0 0
    %483 = vmatpush1.bf16.msra.mxu0 0
    %484 = vmatprep.subr.bf16.mxu0 0
    %485 = vmatpush1.bf16.msra.mxu0 0
    %486 = vmatprep.subr.bf16.mxu0 0
    %487 = vmatpush1.bf16.msra.mxu0 0
    %488 = vmatprep.subr.bf16.mxu0 0
    %489 = vmatpush1.bf16.msra.mxu0 0
    %490 = vmatprep.subr.bf16.mxu0 0
    %491 = vmatpush1.bf16.msra.mxu0 0
    %492 = vmatprep.subr.bf16.mxu0 0
    %493 = vmatpush1.bf16.msra.mxu0 0
    %494 = vmatprep.subr.bf16.mxu0 0
    %495 = vmatpush1.bf16.msra.mxu0 0
    %496 = vmatprep.subr.bf16.mxu0 0
    %497 = vmatpush1.bf16.msra.mxu0 0
    %498 = vmatprep.mubr.bf16.mxu0 0
    %499 = vmatmul.mubr.bf16.gmra.mrb[0].mxu0 %v353
    %v500 = vpop.f32.mrb[0].mxu0
    %v501 = vadd.f32 0.0, %v500
    %v502 = vpop.f32.mrb[0].mxu0
    %v503 = vpop.f32.mrb[0].mxu0
    %v504 = vpop.f32.mrb[0].mxu0
    %505 = vdwg.mxu0
    %v506 = vadd.f32 %v165, %v501
    %v507 = vmul.f32 %v506, 0.5
    %v508 = vsel %vm203, %v506, %v507
    %v509 = vtanh.pop %v508
    %v510 = vmul.f32 %v509, 0.5
    %v511 = vadd.f32 %v510, 0.5
    %v512 = vsel %vm203, %v509, %v511
    %v513 = vmul.f32 %v512, %v329
    %515 = vrot.lane.b32.xlu0 %v512, 64
    %v516 = vpop.permute.xlu0 %515
    %v518 = vmul.f32 %v512, %v516
    %520 = vrot.lane.b32.xlu0 %v518, 32
    %v521 = vpop.permute.xlu0 %520
    %v523 = vadd.f32 %v513, %v521
    %v524 = vtanh.pop %v523
    %526 = vrot.lane.b32.xlu0 %v524, 64
    %v527 = vpop.permute.xlu0 %526
    %v529 = vmul.f32 %v512, %v527
    %v530 = vpack.c.bf16 %v529, %v529
    %532 = vrot.lane.b32.xlu0 %v530, 32
    %v533 = vpop.permute.xlu0 %532
    %v535 = vsel %vm216, %v533, 0
    %537 = vmatprep.subr.bf16.mxu0 0
    %538 = vmatpush1.bf16.msra.mxu0 %v348
    %539 = vmatprep.subr.bf16.mxu0 0
    %540 = vmatpush1.bf16.msra.mxu0 %v349
    %541 = vmatprep.subr.bf16.mxu0 0
    %542 = vmatpush1.bf16.msra.mxu0 0
    %543 = vmatprep.subr.bf16.mxu0 0
    %544 = vmatpush1.bf16.msra.mxu0 0
    %545 = vmatprep.subr.bf16.mxu0 0
    %546 = vmatpush1.bf16.msra.mxu0 0
    %547 = vmatprep.subr.bf16.mxu0 0
    %548 = vmatpush1.bf16.msra.mxu0 0
    %549 = vmatprep.subr.bf16.mxu0 0
    %550 = vmatpush1.bf16.msra.mxu0 0
    %551 = vmatprep.subr.bf16.mxu0 0
    %552 = vmatpush1.bf16.msra.mxu0 0
    %553 = vmatprep.subr.bf16.mxu0 0
    %554 = vmatpush1.bf16.msra.mxu0 0
    %555 = vmatprep.subr.bf16.mxu0 0
    %556 = vmatpush1.bf16.msra.mxu0 0
    %557 = vmatprep.subr.bf16.mxu0 0
    %558 = vmatpush1.bf16.msra.mxu0 0
    %559 = vmatprep.subr.bf16.mxu0 0
    %560 = vmatpush1.bf16.msra.mxu0 0
    %561 = vmatprep.subr.bf16.mxu0 0
    %562 = vmatpush1.bf16.msra.mxu0 0
    %563 = vmatprep.subr.bf16.mxu0 0
    %564 = vmatpush1.bf16.msra.mxu0 0
    %565 = vmatprep.subr.bf16.mxu0 0
    %566 = vmatpush1.bf16.msra.mxu0 0
    %567 = vmatprep.subr.bf16.mxu0 0
    %568 = vmatpush1.bf16.msra.mxu0 0
    %569 = vmatprep.mubr.bf16.mxu0 0
    %570 = vmatmul.mubr.bf16.gmra.mrb[0].mxu0 %v535
    %v571 = vpop.f32.mrb[0].mxu0
    %v572 = vadd.f32 %v461, %v571
    %v573 = vpop.f32.mrb[0].mxu0
    %v574 = vpop.f32.mrb[0].mxu0
    %v575 = vpop.f32.mrb[0].mxu0
    %576 = vdwg.mxu0
    %v577 = vadd.f32 %v572, %v197
    %v578 = vmul.f32 %v577, 0.5
    %v579 = vsel %vm203, %v577, %v578
    %v580 = vtanh.pop %v579
    %v581 = vmul.f32 %v580, 0.5
    %v582 = vadd.f32 %v581, 0.5
    %v583 = vsel %vm203, %v580, %v582
    %v584 = vmul.f32 %v583, %v412
    %586 = vrot.lane.b32.xlu0 %v583, 64
    %v587 = vpop.permute.xlu0 %586
    %v589 = vmul.f32 %v583, %v587
    %591 = vrot.lane.b32.xlu0 %v589, 32
    %v592 = vpop.permute.xlu0 %591
    %v594 = vadd.f32 %v584, %v592
    %v595 = vtanh.pop %v594
    %597 = vrot.lane.b32.xlu0 %v595, 64
    %v598 = vpop.permute.xlu0 %597
    %v600 = vmul.f32 %v583, %v598
    %v601 = vpack.c.bf16 %v600, %v600
    %603 = vrot.lane.b32.xlu0 %v601, 32
    %v604 = vpop.permute.xlu0 %603
    %v606 = vsel %vm216, %v604, 0
    %608 = vmatprep.subr.bf16.mxu0 0
    %609 = vmatpush1.bf16.msra.mxu0 %v212
    %610 = vmatprep.subr.bf16.mxu0 0
    %611 = vmatpush1.bf16.msra.mxu0 %v213
    %612 = vmatprep.subr.bf16.mxu0 0
    %613 = vmatpush1.bf16.msra.mxu0 0
    %614 = vmatprep.subr.bf16.mxu0 0
    %615 = vmatpush1.bf16.msra.mxu0 0
    %616 = vmatprep.subr.bf16.mxu0 0
    %617 = vmatpush1.bf16.msra.mxu0 0
    %618 = vmatprep.subr.bf16.mxu0 0
    %619 = vmatpush1.bf16.msra.mxu0 0
    %620 = vmatprep.subr.bf16.mxu0 0
    %621 = vmatpush1.bf16.msra.mxu0 0
    %622 = vmatprep.subr.bf16.mxu0 0
    %623 = vmatpush1.bf16.msra.mxu0 0
    %624 = vmatprep.subr.bf16.mxu0 0
    %625 = vmatpush1.bf16.msra.mxu0 0
    %626 = vmatprep.subr.bf16.mxu0 0
    %627 = vmatpush1.bf16.msra.mxu0 0
    %628 = vmatprep.subr.bf16.mxu0 0
    %629 = vmatpush1.bf16.msra.mxu0 0
    %630 = vmatprep.subr.bf16.mxu0 0
    %631 = vmatpush1.bf16.msra.mxu0 0
    %632 = vmatprep.subr.bf16.mxu0 0
    %633 = vmatpush1.bf16.msra.mxu0 0
    %634 = vmatprep.subr.bf16.mxu0 0
    %635 = vmatpush1.bf16.msra.mxu0 0
    %636 = vmatprep.subr.bf16.mxu0 0
    %637 = vmatpush1.bf16.msra.mxu0 0
    %638 = vmatprep.subr.bf16.mxu0 0
    %639 = vmatpush1.bf16.msra.mxu0 0
    %640 = vmatprep.mubr.bf16.mxu0 0
    %641 = vmatmul.mubr.bf16.gmra.mrb[0].mxu0 %v606
    %v642 = vpop.f32.mrb[0].mxu0
    %v643 = vadd.f32 0.0, %v642
    %v644 = vpop.f32.mrb[0].mxu0
    %v645 = vpop.f32.mrb[0].mxu0
    %v646 = vpop.f32.mrb[0].mxu0
    %647 = vdwg.mxu0
    %648 = vmatprep.subr.bf16.mxu0 0
    %649 = vmatpush1.bf16.msra.mxu0 %v268
    %650 = vmatprep.subr.bf16.mxu0 0
    %651 = vmatpush1.bf16.msra.mxu0 %v269
    %652 = vmatprep.subr.bf16.mxu0 0
    %653 = vmatpush1.bf16.msra.mxu0 0
    %654 = vmatprep.subr.bf16.mxu0 0
    %655 = vmatpush1.bf16.msra.mxu0 0
    %656 = vmatprep.subr.bf16.mxu0 0
    %657 = vmatpush1.bf16.msra.mxu0 0
    %658 = vmatprep.subr.bf16.mxu0 0
    %659 = vmatpush1.bf16.msra.mxu0 0
    %660 = vmatprep.subr.bf16.mxu0 0
    %661 = vmatpush1.bf16.msra.mxu0 0
    %662 = vmatprep.subr.bf16.mxu0 0
    %663 = vmatpush1.bf16.msra.mxu0 0
    %664 = vmatprep.subr.bf16.mxu0 0
    %665 = vmatpush1.bf16.msra.mxu0 0
    %666 = vmatprep.subr.bf16.mxu0 0
    %667 = vmatpush1.bf16.msra.mxu0 0
    %668 = vmatprep.subr.bf16.mxu0 0
    %669 = vmatpush1.bf16.msra.mxu0 0
    %670 = vmatprep.subr.bf16.mxu0 0
    %671 = vmatpush1.bf16.msra.mxu0 0
    %672 = vmatprep.subr.bf16.mxu0 0
    %673 = vmatpush1.bf16.msra.mxu0 0
    %674 = vmatprep.subr.bf16.mxu0 0
    %675 = vmatpush1.bf16.msra.mxu0 0
    %676 = vmatprep.subr.bf16.mxu0 0
    %677 = vmatpush1.bf16.msra.mxu0 0
    %678 = vmatprep.subr.bf16.mxu0 0
    %679 = vmatpush1.bf16.msra.mxu0 0
    %680 = vmatprep.mubr.bf16.mxu0 0
    %681 = vmatmul.mubr.bf16.gmra.mrb[0].mxu0 %v535
    %v682 = vpop.f32.mrb[0].mxu0
    %v683 = vadd.f32 0.0, %v682
    %v684 = vpop.f32.mrb[0].mxu0
    %v685 = vpop.f32.mrb[0].mxu0
    %v686 = vpop.f32.mrb[0].mxu0
    %687 = vdwg.mxu0
    %v688 = vadd.f32 %v170, %v683
    %v689 = vmul.f32 %v688, 0.5
    %v690 = vsel %vm203, %v688, %v689
    %v691 = vtanh.pop %v690
    %v692 = vmul.f32 %v691, 0.5
    %v693 = vadd.f32 %v692, 0.5
    %v694 = vsel %vm203, %v691, %v693
    %v695 = vmul.f32 %v694, %v523
    %697 = vrot.lane.b32.xlu0 %v694, 64
    %v698 = vpop.permute.xlu0 %697
    %v700 = vmul.f32 %v694, %v698
    %702 = vrot.lane.b32.xlu0 %v700, 32
    %v703 = vpop.permute.xlu0 %702
    %v705 = vadd.f32 %v695, %v703
    %v706 = vtanh.pop %v705
    %708 = vrot.lane.b32.xlu0 %v706, 64
    %v709 = vpop.permute.xlu0 %708
    %v711 = vmul.f32 %v694, %v709
    %v712 = vpack.c.bf16 %v711, %v711
    %714 = vrot.lane.b32.xlu0 %v712, 32
    %v715 = vpop.permute.xlu0 %714
    %v717 = vsel %vm216, %v715, 0
    %719 = vmatprep.subr.bf16.mxu0 0
    %720 = vmatpush1.bf16.msra.mxu0 %v348
    %721 = vmatprep.subr.bf16.mxu0 0
    %722 = vmatpush1.bf16.msra.mxu0 %v349
    %723 = vmatprep.subr.bf16.mxu0 0
    %724 = vmatpush1.bf16.msra.mxu0 0
    %725 = vmatprep.subr.bf16.mxu0 0
    %726 = vmatpush1.bf16.msra.mxu0 0
    %727 = vmatprep.subr.bf16.mxu0 0
    %728 = vmatpush1.bf16.msra.mxu0 0
    %729 = vmatprep.subr.bf16.mxu0 0
    %730 = vmatpush1.bf16.msra.mxu0 0
    %731 = vmatprep.subr.bf16.mxu0 0
    %732 = vmatpush1.bf16.msra.mxu0 0
    %733 = vmatprep.subr.bf16.mxu0 0
    %734 = vmatpush1.bf16.msra.mxu0 0
    %735 = vmatprep.subr.bf16.mxu0 0
    %736 = vmatpush1.bf16.msra.mxu0 0
    %737 = vmatprep.subr.bf16.mxu0 0
    %738 = vmatpush1.bf16.msra.mxu0 0
    %739 = vmatprep.subr.bf16.mxu0 0
    %740 = vmatpush1.bf16.msra.mxu0 0
    %741 = vmatprep.subr.bf16.mxu0 0
    %742 = vmatpush1.bf16.msra.mxu0 0
    %743 = vmatprep.subr.bf16.mxu0 0
    %744 = vmatpush1.bf16.msra.mxu0 0
    %745 = vmatprep.subr.bf16.mxu0 0
    %746 = vmatpush1.bf16.msra.mxu0 0
    %747 = vmatprep.subr.bf16.mxu0 0
    %748 = vmatpush1.bf16.msra.mxu0 0
    %749 = vmatprep.subr.bf16.mxu0 0
    %750 = vmatpush1.bf16.msra.mxu0 0
    %751 = vmatprep.mubr.bf16.mxu0 0
    %752 = vmatmul.mubr.bf16.gmra.mrb[0].mxu0 %v717
    %v753 = vpop.f32.mrb[0].mxu0
    %v754 = vadd.f32 %v643, %v753
    %v755 = vpop.f32.mrb[0].mxu0
    %v756 = vpop.f32.mrb[0].mxu0
    %v757 = vpop.f32.mrb[0].mxu0
    %758 = vdwg.mxu0
    %v759 = vadd.f32 %v754, %v197
    %v760 = vmul.f32 %v759, 0.5
    %v761 = vsel %vm203, %v759, %v760
    %v762 = vtanh.pop %v761
    %v763 = vmul.f32 %v762, 0.5
    %v764 = vadd.f32 %v763, 0.5
    %v765 = vsel %vm203, %v762, %v764
    %v766 = vmul.f32 %v765, %v594
    %768 = vrot.lane.b32.xlu0 %v765, 64
    %v769 = vpop.permute.xlu0 %768
    %v771 = vmul.f32 %v765, %v769
    %773 = vrot.lane.b32.xlu0 %v771, 32
    %v774 = vpop.permute.xlu0 %773
    %v776 = vadd.f32 %v766, %v774
    %v777 = vtanh.pop %v776
    %779 = vrot.lane.b32.xlu0 %v777, 64
    %v780 = vpop.permute.xlu0 %779
    %v782 = vmul.f32 %v765, %v780
    %v783 = vpack.c.bf16 %v782, %v782
    %785 = vrot.lane.b32.xlu0 %v783, 32
    %v786 = vpop.permute.xlu0 %785
    %v788 = vsel %vm216, %v786, 0
    %790 = vmatprep.subr.bf16.mxu0 0
    %791 = vmatpush1.bf16.msra.mxu0 %v212
    %792 = vmatprep.subr.bf16.mxu0 0
    %793 = vmatpush1.bf16.msra.mxu0 %v213
    %794 = vmatprep.subr.bf16.mxu0 0
    %795 = vmatpush1.bf16.msra.mxu0 0
    %796 = vmatprep.subr.bf16.mxu0 0
    %797 = vmatpush1.bf16.msra.mxu0 0
    %798 = vmatprep.subr.bf16.mxu0 0
    %799 = vmatpush1.bf16.msra.mxu0 0
    %800 = vmatprep.subr.bf16.mxu0 0
    %801 = vmatpush1.bf16.msra.mxu0 0
    %802 = vmatprep.subr.bf16.mxu0 0
    %803 = vmatpush1.bf16.msra.mxu0 0
    %804 = vmatprep.subr.bf16.mxu0 0
    %805 = vmatpush1.bf16.msra.mxu0 0
    %806 = vmatprep.subr.bf16.mxu0 0
    %807 = vmatpush1.bf16.msra.mxu0 0
    %808 = vmatprep.subr.bf16.mxu0 0
    %809 = vmatpush1.bf16.msra.mxu0 0
    %810 = vmatprep.subr.bf16.mxu0 0
    %811 = vmatpush1.bf16.msra.mxu0 0
    %812 = vmatprep.subr.bf16.mxu0 0
    %813 = vmatpush1.bf16.msra.mxu0 0
    %814 = vmatprep.subr.bf16.mxu0 0
    %815 = vmatpush1.bf16.msra.mxu0 0
    %816 = vmatprep.subr.bf16.mxu0 0
    %817 = vmatpush1.bf16.msra.mxu0 0
    %818 = vmatprep.subr.bf16.mxu0 0
    %819 = vmatpush1.bf16.msra.mxu0 0
    %820 = vmatprep.subr.bf16.mxu0 0
    %821 = vmatpush1.bf16.msra.mxu0 0
    %822 = vmatprep.mubr.bf16.mxu0 0
    %823 = vmatmul.mubr.bf16.gmra.mrb[0].mxu0 %v788
    %v824 = vpop.f32.mrb[0].mxu0
    %v825 = vadd.f32 0.0, %v824
    %v826 = vpop.f32.mrb[0].mxu0
    %v827 = vpop.f32.mrb[0].mxu0
    %v828 = vpop.f32.mrb[0].mxu0
    %829 = vdwg.mxu0
    %830 = vmatprep.subr.bf16.mxu0 0
    %831 = vmatpush1.bf16.msra.mxu0 %v268
    %832 = vmatprep.subr.bf16.mxu0 0
    %833 = vmatpush1.bf16.msra.mxu0 %v269
    %834 = vmatprep.subr.bf16.mxu0 0
    %835 = vmatpush1.bf16.msra.mxu0 0
    %836 = vmatprep.subr.bf16.mxu0 0
    %837 = vmatpush1.bf16.msra.mxu0 0
    %838 = vmatprep.subr.bf16.mxu0 0
    %839 = vmatpush1.bf16.msra.mxu0 0
    %840 = vmatprep.subr.bf16.mxu0 0
    %841 = vmatpush1.bf16.msra.mxu0 0
    %842 = vmatprep.subr.bf16.mxu0 0
    %843 = vmatpush1.bf16.msra.mxu0 0
    %844 = vmatprep.subr.bf16.mxu0 0
    %845 = vmatpush1.bf16.msra.mxu0 0
    %846 = vmatprep.subr.bf16.mxu0 0
    %847 = vmatpush1.bf16.msra.mxu0 0
    %848 = vmatprep.subr.bf16.mxu0 0
    %849 = vmatpush1.bf16.msra.mxu0 0
    %850 = vmatprep.subr.bf16.mxu0 0
    %851 = vmatpush1.bf16.msra.mxu0 0
    %852 = vmatprep.subr.bf16.mxu0 0
    %853 = vmatpush1.bf16.msra.mxu0 0
    %854 = vmatprep.subr.bf16.mxu0 0
    %855 = vmatpush1.bf16.msra.mxu0 0
    %856 = vmatprep.subr.bf16.mxu0 0
    %857 = vmatpush1.bf16.msra.mxu0 0
    %858 = vmatprep.subr.bf16.mxu0 0
    %859 = vmatpush1.bf16.msra.mxu0 0
    %860 = vmatprep.subr.bf16.mxu0 0
    %861 = vmatpush1.bf16.msra.mxu0 0
    %862 = vmatprep.mubr.bf16.mxu0 0
    %863 = vmatmul.mubr.bf16.gmra.mrb[0].mxu0 %v717
    %v864 = vpop.f32.mrb[0].mxu0
    %v865 = vadd.f32 0.0, %v864
    %v866 = vpop.f32.mrb[0].mxu0
    %v867 = vpop.f32.mrb[0].mxu0
    %v868 = vpop.f32.mrb[0].mxu0
    %869 = vdwg.mxu0
    %v870 = vadd.f32 %v173, %v865
    %v871 = vmul.f32 %v870, 0.5
    %v872 = vsel %vm203, %v870, %v871
    %v873 = vtanh.pop %v872
    %v874 = vmul.f32 %v873, 0.5
    %v875 = vadd.f32 %v874, 0.5
    %v876 = vsel %vm203, %v873, %v875
    %v877 = vmul.f32 %v876, %v705
    %879 = vrot.lane.b32.xlu0 %v876, 64
    %v880 = vpop.permute.xlu0 %879
    %v882 = vmul.f32 %v876, %v880
    %884 = vrot.lane.b32.xlu0 %v882, 32
    %v885 = vpop.permute.xlu0 %884
    %v887 = vadd.f32 %v877, %v885
    %v888 = vtanh.pop %v887
    %890 = vrot.lane.b32.xlu0 %v888, 64
    %v891 = vpop.permute.xlu0 %890
    %v893 = vmul.f32 %v876, %v891
    %v894 = vpack.c.bf16 %v893, %v893
    %896 = vrot.lane.b32.xlu0 %v894, 32
    %v897 = vpop.permute.xlu0 %896
    %v899 = vsel %vm216, %v897, 0
    %901 = vmatprep.subr.bf16.mxu0 0
    %902 = vmatpush1.bf16.msra.mxu0 %v348
    %903 = vmatprep.subr.bf16.mxu0 0
    %904 = vmatpush1.bf16.msra.mxu0 %v349
    %905 = vmatprep.subr.bf16.mxu0 0
    %906 = vmatpush1.bf16.msra.mxu0 0
    %907 = vmatprep.subr.bf16.mxu0 0
    %908 = vmatpush1.bf16.msra.mxu0 0
    %909 = vmatprep.subr.bf16.mxu0 0
    %910 = vmatpush1.bf16.msra.mxu0 0
    %911 = vmatprep.subr.bf16.mxu0 0
    %912 = vmatpush1.bf16.msra.mxu0 0
    %913 = vmatprep.subr.bf16.mxu0 0
    %914 = vmatpush1.bf16.msra.mxu0 0
    %915 = vmatprep.subr.bf16.mxu0 0
    %916 = vmatpush1.bf16.msra.mxu0 0
    %917 = vmatprep.subr.bf16.mxu0 0
    %918 = vmatpush1.bf16.msra.mxu0 0
    %919 = vmatprep.subr.bf16.mxu0 0
    %920 = vmatpush1.bf16.msra.mxu0 0
    %921 = vmatprep.subr.bf16.mxu0 0
    %922 = vmatpush1.bf16.msra.mxu0 0
    %923 = vmatprep.subr.bf16.mxu0 0
    %924 = vmatpush1.bf16.msra.mxu0 0
    %925 = vmatprep.subr.bf16.mxu0 0
    %926 = vmatpush1.bf16.msra.mxu0 0
    %927 = vmatprep.subr.bf16.mxu0 0
    %928 = vmatpush1.bf16.msra.mxu0 0
    %929 = vmatprep.subr.bf16.mxu0 0
    %930 = vmatpush1.bf16.msra.mxu0 0
    %931 = vmatprep.subr.bf16.mxu0 0
    %932 = vmatpush1.bf16.msra.mxu0 0
    %933 = vmatprep.mubr.bf16.mxu0 0
    %934 = vmatmul.mubr.bf16.gmra.mrb[0].mxu0 %v899
    %v935 = vpop.f32.mrb[0].mxu0
    %v936 = vadd.f32 %v825, %v935
    %v937 = vpop.f32.mrb[0].mxu0
    %v938 = vpop.f32.mrb[0].mxu0
    %v939 = vpop.f32.mrb[0].mxu0
    %940 = vdwg.mxu0
    %v941 = vadd.f32 %v936, %v197
    %v942 = vmul.f32 %v941, 0.5
    %v943 = vsel %vm203, %v941, %v942
    %v944 = vtanh.pop %v943
    %v945 = vmul.f32 %v944, 0.5
    %v946 = vadd.f32 %v945, 0.5
    %v947 = vsel %vm203, %v944, %v946
    %v948 = vmul.f32 %v947, %v776
    %950 = vrot.lane.b32.xlu0 %v947, 64
    %v951 = vpop.permute.xlu0 %950
    %v953 = vmul.f32 %v947, %v951
    %955 = vrot.lane.b32.xlu0 %v953, 32
    %v956 = vpop.permute.xlu0 %955
    %v958 = vadd.f32 %v948, %v956
    %v959 = vtanh.pop %v958
    %961 = vrot.lane.b32.xlu0 %v959, 64
    %v962 = vpop.permute.xlu0 %961
    %v964 = vmul.f32 %v947, %v962
    %v965 = vpack.c.bf16 %v964, %v964
    %967 = vrot.lane.b32.xlu0 %v965, 32
    %v968 = vpop.permute.xlu0 %967
    %v970 = vsel %vm216, %v968, 0
    %972 = vmatprep.subr.bf16.mxu0 0
    %973 = vmatpush1.bf16.msra.mxu0 %v212
    %974 = vmatprep.subr.bf16.mxu0 0
    %975 = vmatpush1.bf16.msra.mxu0 %v213
    %976 = vmatprep.subr.bf16.mxu0 0
    %977 = vmatpush1.bf16.msra.mxu0 0
    %978 = vmatprep.subr.bf16.mxu0 0
    %979 = vmatpush1.bf16.msra.mxu0 0
    %980 = vmatprep.subr.bf16.mxu0 0
    %981 = vmatpush1.bf16.msra.mxu0 0
    %982 = vmatprep.subr.bf16.mxu0 0
    %983 = vmatpush1.bf16.msra.mxu0 0
    %984 = vmatprep.subr.bf16.mxu0 0
    %985 = vmatpush1.bf16.msra.mxu0 0
    %986 = vmatprep.subr.bf16.mxu0 0
    %987 = vmatpush1.bf16.msra.mxu0 0
    %988 = vmatprep.subr.bf16.mxu0 0
    %989 = vmatpush1.bf16.msra.mxu0 0
    %990 = vmatprep.subr.bf16.mxu0 0
    %991 = vmatpush1.bf16.msra.mxu0 0
    %992 = vmatprep.subr.bf16.mxu0 0
    %993 = vmatpush1.bf16.msra.mxu0 0
    %994 = vmatprep.subr.bf16.mxu0 0
    %995 = vmatpush1.bf16.msra.mxu0 0
    %996 = vmatprep.subr.bf16.mxu0 0
    %997 = vmatpush1.bf16.msra.mxu0 0
    %998 = vmatprep.subr.bf16.mxu0 0
    %999 = vmatpush1.bf16.msra.mxu0 0
    %1000 = vmatprep.subr.bf16.mxu0 0
    %1001 = vmatpush1.bf16.msra.mxu0 0
    %1002 = vmatprep.subr.bf16.mxu0 0
    %1003 = vmatpush1.bf16.msra.mxu0 0
    %1004 = vmatprep.mubr.bf16.mxu0 0
    %1005 = vmatmul.mubr.bf16.gmra.mrb[0].mxu0 %v970
    %v1006 = vpop.f32.mrb[0].mxu0
    %v1007 = vadd.f32 0.0, %v1006
    %v1008 = vpop.f32.mrb[0].mxu0
    %v1009 = vpop.f32.mrb[0].mxu0
    %v1010 = vpop.f32.mrb[0].mxu0
    %1011 = vdwg.mxu0
    %1012 = vmatprep.subr.bf16.mxu0 0
    %1013 = vmatpush1.bf16.msra.mxu0 %v268
    %1014 = vmatprep.subr.bf16.mxu0 0
    %1015 = vmatpush1.bf16.msra.mxu0 %v269
    %1016 = vmatprep.subr.bf16.mxu0 0
    %1017 = vmatpush1.bf16.msra.mxu0 0
    %1018 = vmatprep.subr.bf16.mxu0 0
    %1019 = vmatpush1.bf16.msra.mxu0 0
    %1020 = vmatprep.subr.bf16.mxu0 0
    %1021 = vmatpush1.bf16.msra.mxu0 0
    %1022 = vmatprep.subr.bf16.mxu0 0
    %1023 = vmatpush1.bf16.msra.mxu0 0
    %1024 = vmatprep.subr.bf16.mxu0 0
    %1025 = vmatpush1.bf16.msra.mxu0 0
    %1026 = vmatprep.subr.bf16.mxu0 0
    %1027 = vmatpush1.bf16.msra.mxu0 0
    %1028 = vmatprep.subr.bf16.mxu0 0
    %1029 = vmatpush1.bf16.msra.mxu0 0
    %1030 = vmatprep.subr.bf16.mxu0 0
    %1031 = vmatpush1.bf16.msra.mxu0 0
    %1032 = vmatprep.subr.bf16.mxu0 0
    %1033 = vmatpush1.bf16.msra.mxu0 0
    %1034 = vmatprep.subr.bf16.mxu0 0
    %1035 = vmatpush1.bf16.msra.mxu0 0
    %1036 = vmatprep.subr.bf16.mxu0 0
    %1037 = vmatpush1.bf16.msra.mxu0 0
    %1038 = vmatprep.subr.bf16.mxu0 0
    %1039 = vmatpush1.bf16.msra.mxu0 0
    %1040 = vmatprep.subr.bf16.mxu0 0
    %1041 = vmatpush1.bf16.msra.mxu0 0
    %1042 = vmatprep.subr.bf16.mxu0 0
    %1043 = vmatpush1.bf16.msra.mxu0 0
    %1044 = vmatprep.mubr.bf16.mxu0 0
    %1045 = vmatmul.mubr.bf16.gmra.mrb[0].mxu0 %v899
    %v1046 = vpop.f32.mrb[0].mxu0
    %v1047 = vadd.f32 0.0, %v1046
    %v1048 = vpop.f32.mrb[0].mxu0
    %v1049 = vpop.f32.mrb[0].mxu0
    %v1050 = vpop.f32.mrb[0].mxu0
    %1051 = vdwg.mxu0
    %v1052 = vadd.f32 %v178, %v1047
    %v1053 = vmul.f32 %v1052, 0.5
    %v1054 = vsel %vm203, %v1052, %v1053
    %v1055 = vtanh.pop %v1054
    %v1056 = vmul.f32 %v1055, 0.5
    %v1057 = vadd.f32 %v1056, 0.5
    %v1058 = vsel %vm203, %v1055, %v1057
    %v1059 = vmul.f32 %v1058, %v887
    %1061 = vrot.lane.b32.xlu0 %v1058, 64
    %v1062 = vpop.permute.xlu0 %1061
    %v1064 = vmul.f32 %v1058, %v1062
    %1066 = vrot.lane.b32.xlu0 %v1064, 32
    %v1067 = vpop.permute.xlu0 %1066
    %v1069 = vadd.f32 %v1059, %v1067
    %v1070 = vtanh.pop %v1069
    %1072 = vrot.lane.b32.xlu0 %v1070, 64
    %v1073 = vpop.permute.xlu0 %1072
    %v1075 = vmul.f32 %v1058, %v1073
    %v1076 = vpack.c.bf16 %v1075, %v1075
    %1078 = vrot.lane.b32.xlu0 %v1076, 32
    %v1079 = vpop.permute.xlu0 %1078
    %v1081 = vsel %vm216, %v1079, 0
    %1083 = vmatprep.subr.bf16.mxu0 0
    %1084 = vmatpush1.bf16.msra.mxu0 %v348
    %1085 = vmatprep.subr.bf16.mxu0 0
    %1086 = vmatpush1.bf16.msra.mxu0 %v349
    %1087 = vmatprep.subr.bf16.mxu0 0
    %1088 = vmatpush1.bf16.msra.mxu0 0
    %1089 = vmatprep.subr.bf16.mxu0 0
    %1090 = vmatpush1.bf16.msra.mxu0 0
    %1091 = vmatprep.subr.bf16.mxu0 0
    %1092 = vmatpush1.bf16.msra.mxu0 0
    %1093 = vmatprep.subr.bf16.mxu0 0
    %1094 = vmatpush1.bf16.msra.mxu0 0
    %1095 = vmatprep.subr.bf16.mxu0 0
    %1096 = vmatpush1.bf16.msra.mxu0 0
    %1097 = vmatprep.subr.bf16.mxu0 0
    %1098 = vmatpush1.bf16.msra.mxu0 0
    %1099 = vmatprep.subr.bf16.mxu0 0
    %1100 = vmatpush1.bf16.msra.mxu0 0
    %1101 = vmatprep.subr.bf16.mxu0 0
    %1102 = vmatpush1.bf16.msra.mxu0 0
    %1103 = vmatprep.subr.bf16.mxu0 0
    %1104 = vmatpush1.bf16.msra.mxu0 0
    %1105 = vmatprep.subr.bf16.mxu0 0
    %1106 = vmatpush1.bf16.msra.mxu0 0
    %1107 = vmatprep.subr.bf16.mxu0 0
    %1108 = vmatpush1.bf16.msra.mxu0 0
    %1109 = vmatprep.subr.bf16.mxu0 0
    %1110 = vmatpush1.bf16.msra.mxu0 0
    %1111 = vmatprep.subr.bf16.mxu0 0
    %1112 = vmatpush1.bf16.msra.mxu0 0
    %1113 = vmatprep.subr.bf16.mxu0 0
    %1114 = vmatpush1.bf16.msra.mxu0 0
    %1115 = vmatprep.mubr.bf16.mxu0 0
    %1116 = vmatmul.mubr.bf16.gmra.mrb[0].mxu0 %v1081
    %v1117 = vpop.f32.mrb[0].mxu0
    %v1118 = vadd.f32 %v1007, %v1117
    %v1119 = vpop.f32.mrb[0].mxu0
    %v1120 = vpop.f32.mrb[0].mxu0
    %v1121 = vpop.f32.mrb[0].mxu0
    %1122 = vdwg.mxu0
    %v1123 = vadd.f32 %v1118, %v197
    %v1124 = vmul.f32 %v1123, 0.5
    %v1125 = vsel %vm203, %v1123, %v1124
    %v1126 = vtanh.pop %v1125
    %v1127 = vmul.f32 %v1126, 0.5
    %v1128 = vadd.f32 %v1127, 0.5
    %v1129 = vsel %vm203, %v1126, %v1128
    %v1130 = vmul.f32 %v1129, %v958
    %1132 = vrot.lane.b32.xlu0 %v1129, 64
    %v1133 = vpop.permute.xlu0 %1132
    %v1135 = vmul.f32 %v1129, %v1133
    %1137 = vrot.lane.b32.xlu0 %v1135, 32
    %v1138 = vpop.permute.xlu0 %1137
    %v1140 = vadd.f32 %v1130, %v1138
    %v1141 = vtanh.pop %v1140
    %1143 = vrot.lane.b32.xlu0 %v1141, 64
    %v1144 = vpop.permute.xlu0 %1143
    %v1146 = vmul.f32 %v1129, %v1144
    %v1147 = vpack.c.bf16 %v1146, %v1146
    %1149 = vrot.lane.b32.xlu0 %v1147, 32
    %v1150 = vpop.permute.xlu0 %1149
    %v1152 = vsel %vm216, %v1150, 0
    %1154 = vmatprep.subr.bf16.mxu0 0
    %1155 = vmatpush1.bf16.msra.mxu0 %v212
    %1156 = vmatprep.subr.bf16.mxu0 0
    %1157 = vmatpush1.bf16.msra.mxu0 %v213
    %1158 = vmatprep.subr.bf16.mxu0 0
    %1159 = vmatpush1.bf16.msra.mxu0 0
    %1160 = vmatprep.subr.bf16.mxu0 0
    %1161 = vmatpush1.bf16.msra.mxu0 0
    %1162 = vmatprep.subr.bf16.mxu0 0
    %1163 = vmatpush1.bf16.msra.mxu0 0
    %1164 = vmatprep.subr.bf16.mxu0 0
    %1165 = vmatpush1.bf16.msra.mxu0 0
    %1166 = vmatprep.subr.bf16.mxu0 0
    %1167 = vmatpush1.bf16.msra.mxu0 0
    %1168 = vmatprep.subr.bf16.mxu0 0
    %1169 = vmatpush1.bf16.msra.mxu0 0
    %1170 = vmatprep.subr.bf16.mxu0 0
    %1171 = vmatpush1.bf16.msra.mxu0 0
    %1172 = vmatprep.subr.bf16.mxu0 0
    %1173 = vmatpush1.bf16.msra.mxu0 0
    %1174 = vmatprep.subr.bf16.mxu0 0
    %1175 = vmatpush1.bf16.msra.mxu0 0
    %1176 = vmatprep.subr.bf16.mxu0 0
    %1177 = vmatpush1.bf16.msra.mxu0 0
    %1178 = vmatprep.subr.bf16.mxu0 0
    %1179 = vmatpush1.bf16.msra.mxu0 0
    %1180 = vmatprep.subr.bf16.mxu0 0
    %1181 = vmatpush1.bf16.msra.mxu0 0
    %1182 = vmatprep.subr.bf16.mxu0 0
    %1183 = vmatpush1.bf16.msra.mxu0 0
    %1184 = vmatprep.subr.bf16.mxu0 0
    %1185 = vmatpush1.bf16.msra.mxu0 0
    %1186 = vmatprep.mubr.bf16.mxu0 0
    %1187 = vmatmul.mubr.bf16.gmra.mrb[0].mxu0 %v1152
    %v1188 = vpop.f32.mrb[0].mxu0
    %v1189 = vadd.f32 0.0, %v1188
    %v1190 = vpop.f32.mrb[0].mxu0
    %v1191 = vpop.f32.mrb[0].mxu0
    %v1192 = vpop.f32.mrb[0].mxu0
    %1193 = vdwg.mxu0
    %1194 = vmatprep.subr.bf16.mxu0 0
    %1195 = vmatpush1.bf16.msra.mxu0 %v268
    %1196 = vmatprep.subr.bf16.mxu0 0
    %1197 = vmatpush1.bf16.msra.mxu0 %v269
    %1198 = vmatprep.subr.bf16.mxu0 0
    %1199 = vmatpush1.bf16.msra.mxu0 0
    %1200 = vmatprep.subr.bf16.mxu0 0
    %1201 = vmatpush1.bf16.msra.mxu0 0
    %1202 = vmatprep.subr.bf16.mxu0 0
    %1203 = vmatpush1.bf16.msra.mxu0 0
    %1204 = vmatprep.subr.bf16.mxu0 0
    %1205 = vmatpush1.bf16.msra.mxu0 0
    %1206 = vmatprep.subr.bf16.mxu0 0
    %1207 = vmatpush1.bf16.msra.mxu0 0
    %1208 = vmatprep.subr.bf16.mxu0 0
    %1209 = vmatpush1.bf16.msra.mxu0 0
    %1210 = vmatprep.subr.bf16.mxu0 0
    %1211 = vmatpush1.bf16.msra.mxu0 0
    %1212 = vmatprep.subr.bf16.mxu0 0
    %1213 = vmatpush1.bf16.msra.mxu0 0
    %1214 = vmatprep.subr.bf16.mxu0 0
    %1215 = vmatpush1.bf16.msra.mxu0 0
    %1216 = vmatprep.subr.bf16.mxu0 0
    %1217 = vmatpush1.bf16.msra.mxu0 0
    %1218 = vmatprep.subr.bf16.mxu0 0
    %1219 = vmatpush1.bf16.msra.mxu0 0
    %1220 = vmatprep.subr.bf16.mxu0 0
    %1221 = vmatpush1.bf16.msra.mxu0 0
    %1222 = vmatprep.subr.bf16.mxu0 0
    %1223 = vmatpush1.bf16.msra.mxu0 0
    %1224 = vmatprep.subr.bf16.mxu0 0
    %1225 = vmatpush1.bf16.msra.mxu0 0
    %1226 = vmatprep.mubr.bf16.mxu0 0
    %1227 = vmatmul.mubr.bf16.gmra.mrb[0].mxu0 %v1081
    %v1228 = vpop.f32.mrb[0].mxu0
    %v1229 = vadd.f32 0.0, %v1228
    %v1230 = vpop.f32.mrb[0].mxu0
    %v1231 = vpop.f32.mrb[0].mxu0
    %v1232 = vpop.f32.mrb[0].mxu0
    %1233 = vdwg.mxu0
    %v1234 = vadd.f32 %v181, %v1229
    %v1235 = vmul.f32 %v1234, 0.5
    %v1236 = vsel %vm203, %v1234, %v1235
    %v1237 = vtanh.pop %v1236
    %v1238 = vmul.f32 %v1237, 0.5
    %v1239 = vadd.f32 %v1238, 0.5
    %v1240 = vsel %vm203, %v1237, %v1239
    %v1241 = vmul.f32 %v1240, %v1069
    %1243 = vrot.lane.b32.xlu0 %v1240, 64
    %v1244 = vpop.permute.xlu0 %1243
    %v1246 = vmul.f32 %v1240, %v1244
    %1248 = vrot.lane.b32.xlu0 %v1246, 32
    %v1249 = vpop.permute.xlu0 %1248
    %v1251 = vadd.f32 %v1241, %v1249
    %v1252 = vtanh.pop %v1251
    %1254 = vrot.lane.b32.xlu0 %v1252, 64
    %v1255 = vpop.permute.xlu0 %1254
    %v1257 = vmul.f32 %v1240, %v1255
    %v1258 = vpack.c.bf16 %v1257, %v1257
    %1260 = vrot.lane.b32.xlu0 %v1258, 32
    %v1261 = vpop.permute.xlu0 %1260
    %v1263 = vsel %vm216, %v1261, 0
    %1265 = vmatprep.subr.bf16.mxu0 0
    %1266 = vmatpush1.bf16.msra.mxu0 %v348
    %1267 = vmatprep.subr.bf16.mxu0 0
    %1268 = vmatpush1.bf16.msra.mxu0 %v349
    %1269 = vmatprep.subr.bf16.mxu0 0
    %1270 = vmatpush1.bf16.msra.mxu0 0
    %1271 = vmatprep.subr.bf16.mxu0 0
    %1272 = vmatpush1.bf16.msra.mxu0 0
    %1273 = vmatprep.subr.bf16.mxu0 0
    %1274 = vmatpush1.bf16.msra.mxu0 0
    %1275 = vmatprep.subr.bf16.mxu0 0
    %1276 = vmatpush1.bf16.msra.mxu0 0
    %1277 = vmatprep.subr.bf16.mxu0 0
    %1278 = vmatpush1.bf16.msra.mxu0 0
    %1279 = vmatprep.subr.bf16.mxu0 0
    %1280 = vmatpush1.bf16.msra.mxu0 0
    %1281 = vmatprep.subr.bf16.mxu0 0
    %1282 = vmatpush1.bf16.msra.mxu0 0
    %1283 = vmatprep.subr.bf16.mxu0 0
    %1284 = vmatpush1.bf16.msra.mxu0 0
    %1285 = vmatprep.subr.bf16.mxu0 0
    %1286 = vmatpush1.bf16.msra.mxu0 0
    %1287 = vmatprep.subr.bf16.mxu0 0
    %1288 = vmatpush1.bf16.msra.mxu0 0
    %1289 = vmatprep.subr.bf16.mxu0 0
    %1290 = vmatpush1.bf16.msra.mxu0 0
    %1291 = vmatprep.subr.bf16.mxu0 0
    %1292 = vmatpush1.bf16.msra.mxu0 0
    %1293 = vmatprep.subr.bf16.mxu0 0
    %1294 = vmatpush1.bf16.msra.mxu0 0
    %1295 = vmatprep.subr.bf16.mxu0 0
    %1296 = vmatpush1.bf16.msra.mxu0 0
    %1297 = vmatprep.mubr.bf16.mxu0 0
    %1298 = vmatmul.mubr.bf16.gmra.mrb[0].mxu0 %v1263
    %v1299 = vpop.f32.mrb[0].mxu0
    %v1300 = vadd.f32 %v1189, %v1299
    %v1301 = vpop.f32.mrb[0].mxu0
    %v1302 = vpop.f32.mrb[0].mxu0
    %v1303 = vpop.f32.mrb[0].mxu0
    %1304 = vdwg.mxu0
    %v1305 = vadd.f32 %v1300, %v197
    %v1306 = vmul.f32 %v1305, 0.5
    %v1307 = vsel %vm203, %v1305, %v1306
    %v1308 = vtanh.pop %v1307
    %v1309 = vmul.f32 %v1308, 0.5
    %v1310 = vadd.f32 %v1309, 0.5
    %v1311 = vsel %vm203, %v1308, %v1310
    %v1312 = vmul.f32 %v1311, %v1140
    %1314 = vrot.lane.b32.xlu0 %v1311, 64
    %v1315 = vpop.permute.xlu0 %1314
    %v1317 = vmul.f32 %v1311, %v1315
    %1319 = vrot.lane.b32.xlu0 %v1317, 32
    %v1320 = vpop.permute.xlu0 %1319
    %v1322 = vadd.f32 %v1312, %v1320
    %v1323 = vtanh.pop %v1322
    %1325 = vrot.lane.b32.xlu0 %v1323, 64
    %v1326 = vpop.permute.xlu0 %1325
    %v1328 = vmul.f32 %v1311, %v1326
    %v1329 = vpack.c.bf16 %v1328, %v1328
    %1331 = vrot.lane.b32.xlu0 %v1329, 32
    %v1332 = vpop.permute.xlu0 %1331
    %v1334 = vsel %vm216, %v1332, 0
    %1336 = vmatprep.subr.bf16.mxu0 0
    %1337 = vmatpush1.bf16.msra.mxu0 %v212
    %1338 = vmatprep.subr.bf16.mxu0 0
    %1339 = vmatpush1.bf16.msra.mxu0 %v213
    %1340 = vmatprep.subr.bf16.mxu0 0
    %1341 = vmatpush1.bf16.msra.mxu0 0
    %1342 = vmatprep.subr.bf16.mxu0 0
    %1343 = vmatpush1.bf16.msra.mxu0 0
    %1344 = vmatprep.subr.bf16.mxu0 0
    %1345 = vmatpush1.bf16.msra.mxu0 0
    %1346 = vmatprep.subr.bf16.mxu0 0
    %1347 = vmatpush1.bf16.msra.mxu0 0
    %1348 = vmatprep.subr.bf16.mxu0 0
    %1349 = vmatpush1.bf16.msra.mxu0 0
    %1350 = vmatprep.subr.bf16.mxu0 0
    %1351 = vmatpush1.bf16.msra.mxu0 0
    %1352 = vmatprep.subr.bf16.mxu0 0
    %1353 = vmatpush1.bf16.msra.mxu0 0
    %1354 = vmatprep.subr.bf16.mxu0 0
    %1355 = vmatpush1.bf16.msra.mxu0 0
    %1356 = vmatprep.subr.bf16.mxu0 0
    %1357 = vmatpush1.bf16.msra.mxu0 0
    %1358 = vmatprep.subr.bf16.mxu0 0
    %1359 = vmatpush1.bf16.msra.mxu0 0
    %1360 = vmatprep.subr.bf16.mxu0 0
    %1361 = vmatpush1.bf16.msra.mxu0 0
    %1362 = vmatprep.subr.bf16.mxu0 0
    %1363 = vmatpush1.bf16.msra.mxu0 0
    %1364 = vmatprep.subr.bf16.mxu0 0
    %1365 = vmatpush1.bf16.msra.mxu0 0
    %1366 = vmatprep.subr.bf16.mxu0 0
    %1367 = vmatpush1.bf16.msra.mxu0 0
    %1368 = vmatprep.mubr.bf16.mxu0 0
    %1369 = vmatmul.mubr.bf16.gmra.mrb[0].mxu0 %v1334
    %v1370 = vpop.f32.mrb[0].mxu0
    %v1371 = vadd.f32 0.0, %v1370
    %v1372 = vpop.f32.mrb[0].mxu0
    %v1373 = vpop.f32.mrb[0].mxu0
    %v1374 = vpop.f32.mrb[0].mxu0
    %1375 = vdwg.mxu0
    %1376 = vmatprep.subr.bf16.mxu0 0
    %1377 = vmatpush1.bf16.msra.mxu0 %v268
    %1378 = vmatprep.subr.bf16.mxu0 0
    %1379 = vmatpush1.bf16.msra.mxu0 %v269
    %1380 = vmatprep.subr.bf16.mxu0 0
    %1381 = vmatpush1.bf16.msra.mxu0 0
    %1382 = vmatprep.subr.bf16.mxu0 0
    %1383 = vmatpush1.bf16.msra.mxu0 0
    %1384 = vmatprep.subr.bf16.mxu0 0
    %1385 = vmatpush1.bf16.msra.mxu0 0
    %1386 = vmatprep.subr.bf16.mxu0 0
    %1387 = vmatpush1.bf16.msra.mxu0 0
    %1388 = vmatprep.subr.bf16.mxu0 0
    %1389 = vmatpush1.bf16.msra.mxu0 0
    %1390 = vmatprep.subr.bf16.mxu0 0
    %1391 = vmatpush1.bf16.msra.mxu0 0
    %1392 = vmatprep.subr.bf16.mxu0 0
    %1393 = vmatpush1.bf16.msra.mxu0 0
    %1394 = vmatprep.subr.bf16.mxu0 0
    %1395 = vmatpush1.bf16.msra.mxu0 0
    %1396 = vmatprep.subr.bf16.mxu0 0
    %1397 = vmatpush1.bf16.msra.mxu0 0
    %1398 = vmatprep.subr.bf16.mxu0 0
    %1399 = vmatpush1.bf16.msra.mxu0 0
    %1400 = vmatprep.subr.bf16.mxu0 0
    %1401 = vmatpush1.bf16.msra.mxu0 0
    %1402 = vmatprep.subr.bf16.mxu0 0
    %1403 = vmatpush1.bf16.msra.mxu0 0
    %1404 = vmatprep.subr.bf16.mxu0 0
    %1405 = vmatpush1.bf16.msra.mxu0 0
    %1406 = vmatprep.subr.bf16.mxu0 0
    %1407 = vmatpush1.bf16.msra.mxu0 0
    %1408 = vmatprep.mubr.bf16.mxu0 0
    %1409 = vmatmul.mubr.bf16.gmra.mrb[0].mxu0 %v1263
    %v1410 = vpop.f32.mrb[0].mxu0
    %v1411 = vadd.f32 0.0, %v1410
    %v1412 = vpop.f32.mrb[0].mxu0
    %v1413 = vpop.f32.mrb[0].mxu0
    %v1414 = vpop.f32.mrb[0].mxu0
    %1415 = vdwg.mxu0
    %v1416 = vadd.f32 %v186, %v1411
    %v1417 = vmul.f32 %v1416, 0.5
    %v1418 = vsel %vm203, %v1416, %v1417
    %v1419 = vtanh.pop %v1418
    %v1420 = vmul.f32 %v1419, 0.5
    %v1421 = vadd.f32 %v1420, 0.5
    %v1422 = vsel %vm203, %v1419, %v1421
    %v1423 = vmul.f32 %v1422, %v1251
    %1425 = vrot.lane.b32.xlu0 %v1422, 64
    %v1426 = vpop.permute.xlu0 %1425
    %v1428 = vmul.f32 %v1422, %v1426
    %1430 = vrot.lane.b32.xlu0 %v1428, 32
    %v1431 = vpop.permute.xlu0 %1430
    %v1433 = vadd.f32 %v1423, %v1431
    %v1434 = vtanh.pop %v1433
    %1436 = vrot.lane.b32.xlu0 %v1434, 64
    %v1437 = vpop.permute.xlu0 %1436
    %v1439 = vmul.f32 %v1422, %v1437
    %v1440 = vpack.c.bf16 %v1439, %v1439
    %1442 = vrot.lane.b32.xlu0 %v1440, 32
    %v1443 = vpop.permute.xlu0 %1442
    %v1445 = vsel %vm216, %v1443, 0
    %1447 = vmatprep.subr.bf16.mxu0 0
    %1448 = vmatpush1.bf16.msra.mxu0 %v348
    %1449 = vmatprep.subr.bf16.mxu0 0
    %1450 = vmatpush1.bf16.msra.mxu0 %v349
    %1451 = vmatprep.subr.bf16.mxu0 0
    %1452 = vmatpush1.bf16.msra.mxu0 0
    %1453 = vmatprep.subr.bf16.mxu0 0
    %1454 = vmatpush1.bf16.msra.mxu0 0
    %1455 = vmatprep.subr.bf16.mxu0 0
    %1456 = vmatpush1.bf16.msra.mxu0 0
    %1457 = vmatprep.subr.bf16.mxu0 0
    %1458 = vmatpush1.bf16.msra.mxu0 0
    %1459 = vmatprep.subr.bf16.mxu0 0
    %1460 = vmatpush1.bf16.msra.mxu0 0
    %1461 = vmatprep.subr.bf16.mxu0 0
    %1462 = vmatpush1.bf16.msra.mxu0 0
    %1463 = vmatprep.subr.bf16.mxu0 0
    %1464 = vmatpush1.bf16.msra.mxu0 0
    %1465 = vmatprep.subr.bf16.mxu0 0
    %1466 = vmatpush1.bf16.msra.mxu0 0
    %1467 = vmatprep.subr.bf16.mxu0 0
    %1468 = vmatpush1.bf16.msra.mxu0 0
    %1469 = vmatprep.subr.bf16.mxu0 0
    %1470 = vmatpush1.bf16.msra.mxu0 0
    %1471 = vmatprep.subr.bf16.mxu0 0
    %1472 = vmatpush1.bf16.msra.mxu0 0
    %1473 = vmatprep.subr.bf16.mxu0 0
    %1474 = vmatpush1.bf16.msra.mxu0 0
    %1475 = vmatprep.subr.bf16.mxu0 0
    %1476 = vmatpush1.bf16.msra.mxu0 0
    %1477 = vmatprep.subr.bf16.mxu0 0
    %1478 = vmatpush1.bf16.msra.mxu0 0
    %1479 = vmatprep.mubr.bf16.mxu0 0
    %1480 = vmatmul.mubr.bf16.gmra.mrb[0].mxu0 %v1445
    %v1481 = vpop.f32.mrb[0].mxu0
    %v1482 = vadd.f32 %v1371, %v1481
    %v1483 = vpop.f32.mrb[0].mxu0
    %v1484 = vpop.f32.mrb[0].mxu0
    %v1485 = vpop.f32.mrb[0].mxu0
    %1486 = vdwg.mxu0
    %v1487 = vadd.f32 %v1482, %v197
    %v1488 = vmul.f32 %v1487, 0.5
    %v1489 = vsel %vm203, %v1487, %v1488
    %v1490 = vtanh.pop %v1489
    %v1491 = vmul.f32 %v1490, 0.5
    %v1492 = vadd.f32 %v1491, 0.5
    %v1493 = vsel %vm203, %v1490, %v1492
    %v1494 = vmul.f32 %v1493, %v1322
    %1496 = vrot.lane.b32.xlu0 %v1493, 64
    %v1497 = vpop.permute.xlu0 %1496
    %v1499 = vmul.f32 %v1493, %v1497
    %1501 = vrot.lane.b32.xlu0 %v1499, 32
    %v1502 = vpop.permute.xlu0 %1501
    %v1504 = vadd.f32 %v1494, %v1502
    %v1505 = vtanh.pop %v1504
    %1507 = vrot.lane.b32.xlu0 %v1505, 64
    %v1508 = vpop.permute.xlu0 %1507
    %v1510 = vmul.f32 %v1493, %v1508
    %v1511 = vpack.c.bf16 %v1510, %v1510
    %1513 = vrot.lane.b32.xlu0 %v1511, 32
    %v1514 = vpop.permute.xlu0 %1513
    %v1516 = vsel %vm216, %v1514, 0
    %1518 = vmatprep.subr.bf16.mxu0 0
    %1519 = vmatpush1.bf16.msra.mxu0 %v212
    %1520 = vmatprep.subr.bf16.mxu0 0
    %1521 = vmatpush1.bf16.msra.mxu0 %v213
    %1522 = vmatprep.subr.bf16.mxu0 0
    %1523 = vmatpush1.bf16.msra.mxu0 0
    %1524 = vmatprep.subr.bf16.mxu0 0
    %1525 = vmatpush1.bf16.msra.mxu0 0
    %1526 = vmatprep.subr.bf16.mxu0 0
    %1527 = vmatpush1.bf16.msra.mxu0 0
    %1528 = vmatprep.subr.bf16.mxu0 0
    %1529 = vmatpush1.bf16.msra.mxu0 0
    %1530 = vmatprep.subr.bf16.mxu0 0
    %1531 = vmatpush1.bf16.msra.mxu0 0
    %1532 = vmatprep.subr.bf16.mxu0 0
    %1533 = vmatpush1.bf16.msra.mxu0 0
    %1534 = vmatprep.subr.bf16.mxu0 0
    %1535 = vmatpush1.bf16.msra.mxu0 0
    %1536 = vmatprep.subr.bf16.mxu0 0
    %1537 = vmatpush1.bf16.msra.mxu0 0
    %1538 = vmatprep.subr.bf16.mxu0 0
    %1539 = vmatpush1.bf16.msra.mxu0 0
    %1540 = vmatprep.subr.bf16.mxu0 0
    %1541 = vmatpush1.bf16.msra.mxu0 0
    %1542 = vmatprep.subr.bf16.mxu0 0
    %1543 = vmatpush1.bf16.msra.mxu0 0
    %1544 = vmatprep.subr.bf16.mxu0 0
    %1545 = vmatpush1.bf16.msra.mxu0 0
    %1546 = vmatprep.subr.bf16.mxu0 0
    %1547 = vmatpush1.bf16.msra.mxu0 0
    %1548 = vmatprep.subr.bf16.mxu0 0
    %1549 = vmatpush1.bf16.msra.mxu0 0
    %1550 = vmatprep.mubr.bf16.mxu0 0
    %1551 = vmatmul.mubr.bf16.gmra.mrb[0].mxu0 %v1516
    %v1552 = vpop.f32.mrb[0].mxu0
    %v1553 = vadd.f32 0.0, %v1552
    %v1554 = vpop.f32.mrb[0].mxu0
    %v1555 = vpop.f32.mrb[0].mxu0
    %v1556 = vpop.f32.mrb[0].mxu0
    %1557 = vdwg.mxu0
    %1558 = vmatprep.subr.bf16.mxu0 0
    %1559 = vmatpush1.bf16.msra.mxu0 %v268
    %1560 = vmatprep.subr.bf16.mxu0 0
    %1561 = vmatpush1.bf16.msra.mxu0 %v269
    %1562 = vmatprep.subr.bf16.mxu0 0
    %1563 = vmatpush1.bf16.msra.mxu0 0
    %1564 = vmatprep.subr.bf16.mxu0 0
    %1565 = vmatpush1.bf16.msra.mxu0 0
    %1566 = vmatprep.subr.bf16.mxu0 0
    %1567 = vmatpush1.bf16.msra.mxu0 0
    %1568 = vmatprep.subr.bf16.mxu0 0
    %1569 = vmatpush1.bf16.msra.mxu0 0
    %1570 = vmatprep.subr.bf16.mxu0 0
    %1571 = vmatpush1.bf16.msra.mxu0 0
    %1572 = vmatprep.subr.bf16.mxu0 0
    %1573 = vmatpush1.bf16.msra.mxu0 0
    %1574 = vmatprep.subr.bf16.mxu0 0
    %1575 = vmatpush1.bf16.msra.mxu0 0
    %1576 = vmatprep.subr.bf16.mxu0 0
    %1577 = vmatpush1.bf16.msra.mxu0 0
    %1578 = vmatprep.subr.bf16.mxu0 0
    %1579 = vmatpush1.bf16.msra.mxu0 0
    %1580 = vmatprep.subr.bf16.mxu0 0
    %1581 = vmatpush1.bf16.msra.mxu0 0
    %1582 = vmatprep.subr.bf16.mxu0 0
    %1583 = vmatpush1.bf16.msra.mxu0 0
    %1584 = vmatprep.subr.bf16.mxu0 0
    %1585 = vmatpush1.bf16.msra.mxu0 0
    %1586 = vmatprep.subr.bf16.mxu0 0
    %1587 = vmatpush1.bf16.msra.mxu0 0
    %1588 = vmatprep.subr.bf16.mxu0 0
    %1589 = vmatpush1.bf16.msra.mxu0 0
    %1590 = vmatprep.mubr.bf16.mxu0 0
    %1591 = vmatmul.mubr.bf16.gmra.mrb[0].mxu0 %v1445
    %v1592 = vpop.f32.mrb[0].mxu0
    %v1593 = vadd.f32 0.0, %v1592
    %v1594 = vpop.f32.mrb[0].mxu0
    %v1595 = vpop.f32.mrb[0].mxu0
    %v1596 = vpop.f32.mrb[0].mxu0
    %1597 = vdwg.mxu0
    %v1598 = vadd.f32 %v189, %v1593
    %v1599 = vmul.f32 %v1598, 0.5
    %v1600 = vsel %vm203, %v1598, %v1599
    %v1601 = vtanh.pop %v1600
    %v1602 = vmul.f32 %v1601, 0.5
    %v1603 = vadd.f32 %v1602, 0.5
    %v1604 = vsel %vm203, %v1601, %v1603
    %v1605 = vmul.f32 %v1604, %v1433
    %1607 = vrot.lane.b32.xlu0 %v1604, 64
    %v1608 = vpop.permute.xlu0 %1607
    %v1610 = vmul.f32 %v1604, %v1608
    %1612 = vrot.lane.b32.xlu0 %v1610, 32
    %v1613 = vpop.permute.xlu0 %1612
    %v1615 = vadd.f32 %v1605, %v1613
    %v1616 = vtanh.pop %v1615
    %1618 = vrot.lane.b32.xlu0 %v1616, 64
    %v1619 = vpop.permute.xlu0 %1618
    %v1621 = vmul.f32 %v1604, %v1619
    %v1622 = vpack.c.bf16 %v1621, %v1621
    %1624 = vrot.lane.b32.xlu0 %v1622, 32
    %v1625 = vpop.permute.xlu0 %1624
    %v1627 = vsel %vm216, %v1625, 0
    %1629 = vmatprep.subr.bf16.mxu0 0
    %1630 = vmatpush1.bf16.msra.mxu0 %v348
    %1631 = vmatprep.subr.bf16.mxu0 0
    %1632 = vmatpush1.bf16.msra.mxu0 %v349
    %1633 = vmatprep.subr.bf16.mxu0 0
    %1634 = vmatpush1.bf16.msra.mxu0 0
    %1635 = vmatprep.subr.bf16.mxu0 0
    %1636 = vmatpush1.bf16.msra.mxu0 0
    %1637 = vmatprep.subr.bf16.mxu0 0
    %1638 = vmatpush1.bf16.msra.mxu0 0
    %1639 = vmatprep.subr.bf16.mxu0 0
    %1640 = vmatpush1.bf16.msra.mxu0 0
    %1641 = vmatprep.subr.bf16.mxu0 0
    %1642 = vmatpush1.bf16.msra.mxu0 0
    %1643 = vmatprep.subr.bf16.mxu0 0
    %1644 = vmatpush1.bf16.msra.mxu0 0
    %1645 = vmatprep.subr.bf16.mxu0 0
    %1646 = vmatpush1.bf16.msra.mxu0 0
    %1647 = vmatprep.subr.bf16.mxu0 0
    %1648 = vmatpush1.bf16.msra.mxu0 0
    %1649 = vmatprep.subr.bf16.mxu0 0
    %1650 = vmatpush1.bf16.msra.mxu0 0
    %1651 = vmatprep.subr.bf16.mxu0 0
    %1652 = vmatpush1.bf16.msra.mxu0 0
    %1653 = vmatprep.subr.bf16.mxu0 0
    %1654 = vmatpush1.bf16.msra.mxu0 0
    %1655 = vmatprep.subr.bf16.mxu0 0
    %1656 = vmatpush1.bf16.msra.mxu0 0
    %1657 = vmatprep.subr.bf16.mxu0 0
    %1658 = vmatpush1.bf16.msra.mxu0 0
    %1659 = vmatprep.subr.bf16.mxu0 0
    %1660 = vmatpush1.bf16.msra.mxu0 0
    %1661 = vmatprep.mubr.bf16.mxu0 0
    %1662 = vmatmul.mubr.bf16.gmra.mrb[0].mxu0 %v1627
    %v1663 = vpop.f32.mrb[0].mxu0
    %v1664 = vadd.f32 %v1553, %v1663
    %v1665 = vpop.f32.mrb[0].mxu0
    %v1666 = vpop.f32.mrb[0].mxu0
    %v1667 = vpop.f32.mrb[0].mxu0
    %1668 = vdwg.mxu0
    %v1669 = vadd.f32 %v1664, %v197
    %v1670 = vmul.f32 %v1669, 0.5
    %v1671 = vsel %vm203, %v1669, %v1670
    %v1672 = vtanh.pop %v1671
    %v1673 = vmul.f32 %v1672, 0.5
    %v1674 = vadd.f32 %v1673, 0.5
    %v1675 = vsel %vm203, %v1672, %v1674
    %v1676 = vmul.f32 %v1675, %v1504
    %1678 = vrot.lane.b32.xlu0 %v1675, 64
    %v1679 = vpop.permute.xlu0 %1678
    %v1681 = vmul.f32 %v1675, %v1679
    %1683 = vrot.lane.b32.xlu0 %v1681, 32
    %v1684 = vpop.permute.xlu0 %1683
    %v1686 = vadd.f32 %v1676, %v1684
    %v1687 = vtanh.pop %v1686
    %1689 = vrot.lane.b32.xlu0 %v1687, 64
    %v1690 = vpop.permute.xlu0 %1689
    %v1692 = vmul.f32 %v1675, %v1690
    %v1693 = vpack.c.bf16 %v1692, %v1692
    %v1694 = vld [vmem:[%s7] sm:$0xf]
    %v1695 = vld [vmem:[%s7 + $0x4] sm:$0xf]
    %v1696 = vld [vmem:[%s7 + $0x8] sm:$0xf]
    %v1697 = vld [vmem:[%s7 + $0xc] sm:$0xf]
    %v1698 = vld [vmem:[%s8] sm:$0x1]
    %v1700 = vlaneseq
    %v1701 = vshrl.u32 %v1700, 7
    %v1702 = vsub.s32 0, %v1701
    %v1703 = vrot.slane %v1698, %v1702
    %1706 = vrot.lane.b32.xlu0 %v1693, 32
    %v1707 = vpop.permute.xlu0 %1706
    %v1712 = vunpack.c.l.b16 %v1694
    %v1713 = vunpack.c.l.b16 %v1695
    %v1714 = vunpack.c.l.b16 %v1696
    %v1715 = vunpack.c.l.b16 %v1697
    %v1716 = vpack.c.b16 %v1713, %v1712
    %v1717 = vpack.c.b16 %v1715, %v1714
    %v1721 = vsel %vm216, %v1707, 0
    %1723 = vmatprep.subr.bf16.mxu0 0
    %1724 = vmatpush1.bf16.msra.mxu0 %v1716
    %1725 = vmatprep.subr.bf16.mxu0 0
    %1726 = vmatpush1.bf16.msra.mxu0 %v1717
    %1727 = vmatprep.subr.bf16.mxu0 0
    %1728 = vmatpush1.bf16.msra.mxu0 0
    %1729 = vmatprep.subr.bf16.mxu0 0
    %1730 = vmatpush1.bf16.msra.mxu0 0
    %1731 = vmatprep.subr.bf16.mxu0 0
    %1732 = vmatpush1.bf16.msra.mxu0 0
    %1733 = vmatprep.subr.bf16.mxu0 0
    %1734 = vmatpush1.bf16.msra.mxu0 0
    %1735 = vmatprep.subr.bf16.mxu0 0
    %1736 = vmatpush1.bf16.msra.mxu0 0
    %1737 = vmatprep.subr.bf16.mxu0 0
    %1738 = vmatpush1.bf16.msra.mxu0 0
    %1739 = vmatprep.subr.bf16.mxu0 0
    %1740 = vmatpush1.bf16.msra.mxu0 0
    %1741 = vmatprep.subr.bf16.mxu0 0
    %1742 = vmatpush1.bf16.msra.mxu0 0
    %1743 = vmatprep.subr.bf16.mxu0 0
    %1744 = vmatpush1.bf16.msra.mxu0 0
    %1745 = vmatprep.subr.bf16.mxu0 0
    %1746 = vmatpush1.bf16.msra.mxu0 0
    %1747 = vmatprep.subr.bf16.mxu0 0
    %1748 = vmatpush1.bf16.msra.mxu0 0
    %1749 = vmatprep.subr.bf16.mxu0 0
    %1750 = vmatpush1.bf16.msra.mxu0 0
    %1751 = vmatprep.subr.bf16.mxu0 0
    %1752 = vmatpush1.bf16.msra.mxu0 0
    %1753 = vmatprep.subr.bf16.mxu0 0
    %1754 = vmatpush1.bf16.msra.mxu0 0
    %1755 = vmatprep.mubr.bf16.mxu0 0
    %1756 = vmatmul.mubr.bf16.gmra.mrb[0].mxu0 %v1721
    %v1757 = vpop.f32.mrb[0].mxu0
    %v1758 = vadd.f32 %v1703, %v1757
    %v1759 = vpop.f32.mrb[0].mxu0
    %v1760 = vpop.f32.mrb[0].mxu0
    %v1761 = vpop.f32.mrb[0].mxu0
    %1762 = vdwg.mxu0
    %vm1763 = vcmask 64512
    %v1764 = vsel %vm1763, %v1758, -inf
    %1765 = vmax.xlane.f32.xlu0 %v1764
    %v1766 = vpop.xlane.xlu0 %1765
    %v1767 = vsub.f32 %v1758, %v1766
    %v1768 = vmul.f32 %v1767, 1.442695
    %v1769 = vpow.pop %v1768
    %v1770 = vsel %vm1763, %v1769, 0.0
    %1771 = vadd.xlane.f32.xlu0 %v1770
    %v1772 = vpop.xlane.xlu0 %1771
    %v1773 = vrcp.pop %v1772
    %v1774 = vmul.f32 %v1769, %v1773
    %1775 = vst.msk [vmem:[#allocation8] sm:$0xff] %vm1763, %v1774
    // Predicated region
    $region50: #{tpu_custom_call.1} parent=1 // pred_check
      _
    $region51: #{tpu_custom_call.1} parent=1 // pred_check_branch
      %1777 = sbr.rel (0) target = $region53
    $region52: #{tpu_custom_call.1} parent=1 // pred_region
      %s1779 = ssub.s32 128, 128
      %1780 = vsyncadd [#allocation4], %s1779
      %s1782 = sshll.u32 [#allocation8], 4
      %s1783 = int_to_ptr.vmem [resolvable:$true] %s1782
      %1785 = dma.vmem_to_hbm [thread:$0]  %s1783, 128, %s9, [#allocation4]
    $region53: #{tpu_custom_call.1} parent=1 // pred_fallthru
      _
    // Predicated region
    $region54: #{tpu_custom_call.1} parent=1 // pred_check
      _
    $region55: #{tpu_custom_call.1} parent=1 // pred_check_branch
      %1787 = sbr.rel (0) target = $region57
    $region56: #{tpu_custom_call.1} parent=1 // pred_region
      %1788 = dma.done [#allocation4], 128
    $region57: #{tpu_custom_call.1} parent=1 // pred_fallthru
      _
    %1789 = vsyncpa [#allocation3], 1
    %1790 = vsyncpa [#allocation6], 1
    %1791 = vsyncpa [#allocation4], 1

</llo_original>
